<compile_context>
chip_gen: v6e
topology: v6e:2x2x1
jax: 0.10.0
libtpu: 0.0.40
codegen_flags: <defaults>
</compile_context>

<pallas_src>
import functools

import numpy as np
import jax
import jax.numpy as jnp
from jax import lax
from jax.experimental import pallas as pl
from jax.experimental.pallas import tpu as pltpu


# ---------------------------------------------------------------------------
# Generation-dependent VMEM budget
# ---------------------------------------------------------------------------
_VMEM_LIMIT_CACHE = None


def _vmem_limit_bytes():
    global _VMEM_LIMIT_CACHE
    if _VMEM_LIMIT_CACHE is None:
        limit = 64 << 20  # safe default (also fine for v7x's 64 MiB/TC)
        try:
            cap = int(getattr(pltpu.get_tpu_info(), "vmem_capacity_bytes", 0))
            if cap > 0:
                limit = max(32 << 20, min(cap - (8 << 20), 112 << 20))
        except Exception:
            pass
        _VMEM_LIMIT_CACHE = limit
    return _VMEM_LIMIT_CACHE


def _largest_divisor_leq(n, cap):
    cap = max(1, min(n, cap))
    for d in range(cap, 0, -1):
        if n % d == 0:
            return d
    return 1


# ---------------------------------------------------------------------------
# Conv 3x3 (stride 1, pad 1) + bias (+ReLU), row-tiled with BlockSpec halos
# ---------------------------------------------------------------------------
def _conv3x3_kernel(top_ref, mid_ref, bot_ref, w_ref, b_ref, o_ref, xpad_ref,
                    *, TR, W, apply_relu):
    """One (row-tile x Cout-tile) step of a direct 3x3 conv.

    top_ref : (1, 1, W, Cin)   bf16  row r*TR-1 (clamped; zeroed at r==0)
    mid_ref : (1, TR, W, Cin)  bf16  rows [r*TR, (r+1)*TR)
    bot_ref : (1, 1, W, Cin)   bf16  row (r+1)*TR (clamped; zeroed at last r)
    w_ref   : (9, Cin, TCO)    bf16  weights, tap-major (3*dh+dw)
    b_ref   : (1, TCO)         f32
    o_ref   : (1, TR, W, TCO)  bf16
    xpad_ref: (TR+2, W+2, Cin) bf16  scratch: zero-padded slab assembled here
    """
    Cin = mid_ref.shape[3]
    Cout = o_ref.shape[3]
    r = pl.program_id(2)
    n_r = pl.num_programs(2)

    # Assemble the zero-padded slab.  Border columns are re-zeroed every step:
    # grid axes are 'parallel' (megacore-split), so no cross-step persistence
    # of the scratch is assumed.
    zcol = jnp.zeros((TR + 2, 1, Cin), xpad_ref.dtype)
    xpad_ref[:, 0:1, :] = zcol
    xpad_ref[:, W + 1:W + 2, :] = zcol
    xpad_ref[1:TR + 1, 1:W + 1, :] = mid_ref[0]

    zrow = jnp.zeros((1, W, Cin), xpad_ref.dtype)

    @pl.when(r == 0)
    def _():
        xpad_ref[0:1, 1:W + 1, :] = zrow

    @pl.when(r > 0)
    def _():
        xpad_ref[0:1, 1:W + 1, :] = top_ref[0]

    @pl.when(r == n_r - 1)
    def _():
        xpad_ref[TR + 1:TR + 2, 1:W + 1, :] = zrow

    @pl.when(r < n_r - 1)
    def _():
        xpad_ref[TR + 1:TR + 2, 1:W + 1, :] = bot_ref[0]

    # Nine shifted MXU dots with f32 accumulation; fused bias + ReLU epilogue.
    acc = jnp.zeros((TR * W, Cout), jnp.float32)
    for dh in range(3):
        for dw in range(3):
            patch = xpad_ref[dh:dh + TR, dw:dw + W, :].reshape(TR * W, Cin)
            acc = acc + jnp.dot(patch, w_ref[3 * dh + dw],
                                preferred_element_type=jnp.float32)
    acc = acc + b_ref[...].astype(jnp.float32)
    if apply_relu:
        acc = jnp.maximum(acc, 0.0)
    o_ref[0] = acc.reshape(TR, W, Cout).astype(o_ref.dtype)


def _matmul_bias_act_kernel(x_ref, w_ref, b_ref, o_ref, *, TR, W, apply_relu):
    """Row-tiled matmul + bias (+ReLU) for the im2col'd first conv."""
    K = x_ref.shape[3]
    Cout = o_ref.shape[3]
    acc = jnp.dot(x_ref[0].reshape(TR * W, K), w_ref[...],
                  preferred_element_type=jnp.float32)
    acc = acc + b_ref[...].astype(jnp.float32)
    if apply_relu:
        acc = jnp.maximum(acc, 0.0)
    o_ref[0] = acc.reshape(TR, W, Cout).astype(o_ref.dtype)


def _conv3x3_im2col(x_nhwc, w, b, *, apply_relu, row_tile=None):
    """First-conv path (Cin < 8, e.g. RGB): wrapper im2col -> K = 9*Cin.

    Nine K=3 dots would use ~1% of the MXU depth and waste the 128-lane pad on
    a 3-wide operand; the (N,H,W,9*Cin) im2col tensor is tiny for Cin<=4 so the
    one extra HBM pass is negligible (first layer is ~1% of VGG16 FLOPs)."""
    N, H, W, Cin = x_nhwc.shape
    Cout = w.shape[0]
    K = 9 * Cin

    xp = jnp.pad(x_nhwc, ((0, 0), (1, 1), (1, 1), (0, 0)))
    cols = [xp[:, dh:dh + H, dw:dw + W, :] for dh in range(3) for dw in range(3)]
    xcol = jnp.concatenate(cols, axis=-1).astype(jnp.bfloat16)     # (N,H,W,9*Cin)
    wmat = jnp.transpose(w, (2, 3, 1, 0)).reshape(K, Cout).astype(jnp.bfloat16)
    b2 = b.reshape(1, Cout).astype(jnp.float32)

    if row_tile is None:
        per_row = W * (2 * K + 6 * Cout)
        cap = max(1, (12 << 20) // max(per_row, 1))
        if N < 2:
            cap = min(cap, max(H // 2, 1))       # >=2-way parallel extent (v7x)
        TR = _largest_divisor_leq(H, cap)
    else:
        assert H % row_tile == 0
        TR = row_tile

    kernel = functools.partial(_matmul_bias_act_kernel, TR=TR, W=W,
                               apply_relu=apply_relu)
    return pl.pallas_call(
        kernel,
        grid=(N, H // TR),
        in_specs=[
            pl.BlockSpec((1, TR, W, K), lambda n, r: (n, r, 0, 0)),
            pl.BlockSpec((K, Cout), lambda n, r: (0, 0)),
            pl.BlockSpec((1, Cout), lambda n, r: (0, 0)),
        ],
        out_specs=pl.BlockSpec((1, TR, W, Cout), lambda n, r: (n, r, 0, 0)),
        out_shape=jax.ShapeDtypeStruct((N, H, W, Cout), jnp.bfloat16),
        compiler_params=pltpu.CompilerParams(
            dimension_semantics=("parallel", "parallel"),
            vmem_limit_bytes=_vmem_limit_bytes()),
        cost_estimate=pl.CostEstimate(
            flops=2 * N * H * W * K * Cout, transcendentals=0,
            bytes_accessed=N * H * W * (K + Cout) * 2 + K * Cout * 2),
    )(xcol, wmat, b2)


def conv3x3(x_nhwc, w, b, *, apply_relu, row_tile=None):
    """Conv2d(k=3, s=1, p=1) [+ fused ReLU].  w: (Cout,Cin,3,3), b: (Cout,)."""
    N, H, W, Cin = x_nhwc.shape
    Cout = w.shape[0]

    if Cin < 8:
        return _conv3x3_im2col(x_nhwc, w, b, apply_relu=apply_relu,
                               row_tile=row_tile)

    # Cout tile.  TODO(synk): tco=128 on v5e (128x128 MXU, single vst slot).
    if Cout <= 256:
        tco = Cout
    elif Cout % 256 == 0:
        tco = 256
    elif Cout % 128 == 0:
        tco = 128
    else:
        tco = Cout
    nco = Cout // tco

    x = x_nhwc.astype(jnp.bfloat16)
    w9 = jnp.transpose(w, (2, 3, 1, 0)).reshape(9, Cin, Cout).astype(jnp.bfloat16)
    b2 = b.reshape(1, Cout).astype(jnp.float32)

    if row_tile is None:
        # bytes per output row: input+pad-scratch (bf16) + f32 acc + bf16 out.
        per_row = W * (4 * Cin + 6 * tco)
        cap = max(1, (12 << 20) // max(per_row, 1))
        if N * nco < 2:
            cap = min(cap, max(H // 2, 1))       # >=2-way parallel extent (v7x)
        TR = _largest_divisor_leq(H, cap)
    else:
        assert H % row_tile == 0
        TR = row_tile
    nR = H // TR

    kernel = functools.partial(_conv3x3_kernel, TR=TR, W=W, apply_relu=apply_relu)
    flops = 2 * N * H * W * 9 * Cin * Cout
    bytes_accessed = (N * H * W * Cin * 2 + 9 * Cin * Cout * 2 + Cout * 4
                      + N * H * W * Cout * 2)

    return pl.pallas_call(
        kernel,
        # co outermost -> the per-layer weight tile stays resident across the
        # inner (N, row-block) axes; rows give parallel extent when N*nco==1.
        grid=(nco, N, nR),
        in_specs=[
            pl.BlockSpec((1, 1, W, Cin),
                         lambda co, n, r: (n, jnp.maximum(r * TR - 1, 0), 0, 0)),
            pl.BlockSpec((1, TR, W, Cin), lambda co, n, r: (n, r, 0, 0)),
            pl.BlockSpec((1, 1, W, Cin),
                         lambda co, n, r: (n, jnp.minimum((r + 1) * TR, H - 1), 0, 0)),
            pl.BlockSpec((9, Cin, tco), lambda co, n, r: (0, 0, co)),
            pl.BlockSpec((1, tco), lambda co, n, r: (0, co)),
        ],
        out_specs=pl.BlockSpec((1, TR, W, tco), lambda co, n, r: (n, r, 0, co)),
        out_shape=jax.ShapeDtypeStruct((N, H, W, Cout), jnp.bfloat16),
        scratch_shapes=[pltpu.VMEM((TR + 2, W + 2, Cin), jnp.bfloat16)],
        compiler_params=pltpu.CompilerParams(
            dimension_semantics=("parallel", "parallel", "parallel"),
            vmem_limit_bytes=_vmem_limit_bytes()),
        cost_estimate=pl.CostEstimate(flops=flops, transcendentals=0,
                                      bytes_accessed=bytes_accessed),
    )(x, x, x, w9, b2)


# ---------------------------------------------------------------------------
# Standalone ReLU (only for a ReLU not preceded by a conv -- never in VGG)
# ---------------------------------------------------------------------------
def _relu_kernel(x_ref, o_ref):
    o_ref[...] = jnp.maximum(x_ref[...], 0.0).astype(o_ref.dtype)


def relu(x_nhwc):
    N, H, W, C = x_nhwc.shape
    tr = _largest_divisor_leq(H, max(1, (4 << 20) // max(2 * W * C, 1)))
    return pl.pallas_call(
        _relu_kernel,
        grid=(N, H // tr),
        in_specs=[pl.BlockSpec((1, tr, W, C), lambda n, r: (n, r, 0, 0))],
        out_specs=pl.BlockSpec((1, tr, W, C), lambda n, r: (n, r, 0, 0)),
        out_shape=jax.ShapeDtypeStruct(x_nhwc.shape, x_nhwc.dtype),
        compiler_params=pltpu.CompilerParams(
            dimension_semantics=("parallel", "parallel"),
            vmem_limit_bytes=_vmem_limit_bytes()),
    )(x_nhwc)


# ---------------------------------------------------------------------------
# MaxPool2d(kernel=2, stride=2, return_indices=True)
# ---------------------------------------------------------------------------
def _maxpool_kernel(x_ref, o_ref, idx_ref, *, C, W, trp):
    """x_ref: (1, trp, 2, Wo, 2C) -- row parity on dim 2, [left|right] packed
    on the last dim.  Outputs: pooled value + PyTorch flat index (H*W plane)."""
    x = x_ref[0]
    top = x[:, 0, :, :]
    bot = x[:, 1, :, :]
    a = top[:, :, :C]                  # (2i  , 2j  )
    b = top[:, :, C:]                  # (2i  , 2j+1)
    c = bot[:, :, :C]                  # (2i+1, 2j  )
    d = bot[:, :, C:]                  # (2i+1, 2j+1)

    t = pl.program_id(1)
    i = t * trp + lax.broadcasted_iota(jnp.int32, a.shape, 0)
    j = lax.broadcasted_iota(jnp.int32, a.shape, 1)
    base = (2 * i) * W + 2 * j
    i00, i01, i10, i11 = base, base + 1, base + W, base + W + 1

    # Tie-break: first maximum in row-major window order (PyTorch CPU).
    m_top = jnp.maximum(a, b)
    k_top = jnp.where(a >= b, i00, i01)
    m_bot = jnp.maximum(c, d)
    k_bot = jnp.where(c >= d, i10, i11)

    o_ref[0] = jnp.maximum(m_top, m_bot).astype(o_ref.dtype)
    idx_ref[0] = jnp.where(m_top >= m_bot, k_top, k_bot)


def maxpool2x2_with_indices(x_nhwc):
    N, H, W, C = x_nhwc.shape
    assert H % 2 == 0 and W % 2 == 0   # TODO(synk): odd sizes (never in VGG16)
    Ho, Wo = H // 2, W // 2

    # Free row-major reshape: (N,H,W,C) -> (N,Ho,2,Wo,2C); no strided HBM copy.
    xr = x_nhwc.reshape(N, Ho, 2, Wo, 2 * C)

    # Multi-MiB blocks: bf16 in+out plus the int32 index plane per output row.
    per_row = 7 * W * C
    cap = max(1, (4 << 20) // max(per_row, 1))
    if N < 2:
        cap = min(cap, max(Ho // 2, 1))
    trp = _largest_divisor_leq(Ho, cap)

    out, idx = pl.pallas_call(
        functools.partial(_maxpool_kernel, C=C, W=W, trp=trp),
        grid=(N, Ho // trp),
        in_specs=[pl.BlockSpec((1, trp, 2, Wo, 2 * C),
                               lambda n, t: (n, t, 0, 0, 0))],
        out_specs=(pl.BlockSpec((1, trp, Wo, C), lambda n, t: (n, t, 0, 0)),
                   pl.BlockSpec((1, trp, Wo, C), lambda n, t: (n, t, 0, 0))),
        out_shape=(jax.ShapeDtypeStruct((N, Ho, Wo, C), x_nhwc.dtype),
                   jax.ShapeDtypeStruct((N, Ho, Wo, C), jnp.int32)),
        compiler_params=pltpu.CompilerParams(
            dimension_semantics=("parallel", "parallel"),
            vmem_limit_bytes=_vmem_limit_bytes()),
    )(xr)
    # TODO(synk): PyTorch returns int64 pool indices; values are identical.
    return out, idx


# ---------------------------------------------------------------------------
# VGG16_X_Enc forward
# ---------------------------------------------------------------------------
def vgg16_x_enc_forward(x_nchw, layers):
    x = jnp.transpose(x_nchw, (0, 2, 3, 1)).astype(jnp.bfloat16)   # NCHW->NHWC
    all_maxpools = []
    i = 0
    while i < len(layers):
        kind = layers[i][0]
        if kind == "conv":
            fuse = (i + 1 < len(layers)) and layers[i + 1][0] == "relu"
            x = conv3x3(x, layers[i][1], layers[i][2], apply_relu=fuse)
            i += 2 if fuse else 1
        elif kind == "relu":
            x = relu(x)
            i += 1
        elif kind == "maxpool":
            x, idx = maxpool2x2_with_indices(x)
            all_maxpools.append(jnp.transpose(idx, (0, 3, 1, 2)))  # -> NCHW
            i += 1
        else:
            raise ValueError(kind)
    out = jnp.transpose(x, (0, 3, 1, 2)).astype(jnp.float32)       # NHWC->NCHW
    return out, all_maxpools


# ---------------------------------------------------------------------------
# Pure-JAX f32 reference (values only) for the correctness check
# ---------------------------------------------------------------------------
def _ref_forward_values(x, layers):
    h = x
    for l in layers:
        if l[0] == "conv":
            w, b = l[1], l[2]
            h = lax.conv_general_dilated(
                h, w, window_strides=(1, 1), padding=((1, 1), (1, 1)),
                dimension_numbers=("NCHW", "OIHW", "NCHW"))
            h = h + b.reshape(1, -1, 1, 1)
        elif l[0] == "relu":
            h = jnp.maximum(h, 0.0)
        else:
            h = lax.reduce_window(h, -jnp.inf, lax.max,
                                  (1, 1, 2, 2), (1, 1, 2, 2), "VALID")
    return h


# ---------------------------------------------------------------------------
# Deterministic smoke + correctness tests
# ---------------------------------------------------------------------------
if __name__ == "__main__":
    key = jax.random.PRNGKey(0)

    # ---- unit check: row-tiled halo conv path with multiple row blocks -----
    key, k1, k2 = jax.random.split(key, 3)
    xt = jax.random.normal(k1, (1, 8, 16, 16), jnp.float32)        # NCHW, Cin=8
    wt = 0.1 * jax.random.normal(k2, (16, 8, 3, 3), jnp.float32)
    bt = jnp.linspace(-0.1, 0.1, 16, dtype=jnp.float32)
    yk = conv3x3(jnp.transpose(xt, (0, 2, 3, 1)).astype(jnp.bfloat16),
                 wt, bt, apply_relu=False, row_tile=4)             # 4 row blocks
    yk = jnp.transpose(yk, (0, 3, 1, 2)).astype(jnp.float32)
    yr = lax.conv_general_dilated(xt, wt, (1, 1), ((1, 1), (1, 1)),
                                  dimension_numbers=("NCHW", "OIHW", "NCHW"))
    yr = yr + bt.reshape(1, -1, 1, 1)
    assert jnp.allclose(yk, yr, rtol=5e-2, atol=5e-2), "halo conv mismatch"

    # ---- unit check: maxpool values + PyTorch flat indices (distinct vals) -
    vals = np.random.RandomState(0).permutation(4 * 4 * 8).astype(np.float32)
    xpool_nchw = vals.reshape(1, 8, 4, 4)
    po, pi = maxpool2x2_with_indices(
        jnp.asarray(np.transpose(xpool_nchw, (0, 2, 3, 1))).astype(jnp.bfloat16))
    exp_idx = np.zeros((8, 2, 2), np.int32)
    exp_val = np.zeros((8, 2, 2), np.float32)
    for ch in range(8):
        for ii in range(2):
            for jj in range(2):
                win = xpool_nchw[0, ch, 2 * ii:2 * ii + 2, 2 * jj:2 * jj + 2]
                kk = int(np.argmax(win))
                exp_val[ch, ii, jj] = win.flat[kk]
                exp_idx[ch, ii, jj] = (2 * ii + kk // 2) * 4 + (2 * jj + kk % 2)
    got_idx = np.transpose(np.asarray(pi[0]), (2, 0, 1))
    got_val = np.transpose(np.asarray(po[0], np.float32), (2, 0, 1))
    assert np.array_equal(got_idx, exp_idx), "pool index mismatch"
    assert np.allclose(got_val, exp_val), "pool value mismatch"

    # ---- full forward on a small VGG-style encoder config ------------------
    #   Conv(4->8) ReLU Conv(8->8) ReLU MaxPool Conv(8->16) ReLU MaxPool
    cfg = [(4, 8), "R", (8, 8), "R", "M", (8, 16), "R", "M"]
    layers = []
    for spec in cfg:
        if spec == "R":
            layers.append(("relu",))
        elif spec == "M":
            layers.append(("maxpool",))
        else:
            cin, cout = spec
            key, wk = jax.random.split(key)
            std = (2.0 / (cout * 3 * 3)) ** 0.5   # kaiming fan_out / relu; bias=0
            w = std * jax.random.normal(wk, (cout, cin, 3, 3), jnp.float32)
            b = jnp.zeros((cout,), jnp.float32)
            layers.append(("conv", w, b))

    key, xk = jax.random.split(key)
    x = jax.random.normal(xk, (2, 4, 16, 16), jnp.float32)         # NCHW input

    out, all_maxpools = vgg16_x_enc_forward(x, layers)
    jax.block_until_ready(out)
    for idx in all_maxpools:
        jax.block_until_ready(idx)

    assert out.shape == (2, 16, 4, 4) and out.dtype == jnp.float32
    assert all_maxpools[0].shape == (2, 8, 8, 8)
    assert all_maxpools[1].shape == (2, 16, 4, 4)
    assert all_maxpools[0].dtype == jnp.int32

    ref = _ref_forward_values(x, layers)
    assert jnp.allclose(out, ref, rtol=1e-1, atol=1e-1), "forward mismatch"

    print("KERNEL_OK")
</pallas_src>

<mosaic_0001>
module attributes {stable_mosaic.version = 11 : i64} {
  func.func @_conv3x3_kernel(%arg0: i32, %arg1: i32, %arg2: i32, %arg3: memref<1x1x16x8xbf16, #tpu.memory_space<vmem>>, %arg4: memref<1x4x16x8xbf16, #tpu.memory_space<vmem>>, %arg5: memref<1x1x16x8xbf16, #tpu.memory_space<vmem>>, %arg6: memref<9x8x16xbf16, #tpu.memory_space<vmem>>, %arg7: memref<1x16xf32, #tpu.memory_space<vmem>>, %arg8: memref<1x4x16x16xbf16, #tpu.memory_space<vmem>>, %arg9: memref<6x18x8xbf16, #tpu.memory_space<vmem>>) attributes {dimension_semantics = [#tpu.dimension_semantics<parallel>, #tpu.dimension_semantics<parallel>, #tpu.dimension_semantics<parallel>], iteration_bounds = array<i64: 1, 1, 4>, scalar_prefetch = 0 : i64, scratch_operands = 1 : i64, tpu.core_type = #tpu.core_type<tc>, window_params = [{transform_indices = @transform_0, window_bounds = array<i64: 1, 1, 16, 8>}, {transform_indices = @transform_1, window_bounds = array<i64: 1, 4, 16, 8>}, {transform_indices = @transform_2, window_bounds = array<i64: 1, 1, 16, 8>}, {transform_indices = @transform_3, window_bounds = array<i64: 9, 8, 16>}, {transform_indices = @transform_4, window_bounds = array<i64: 1, 16>}, {transform_indices = @transform_5, window_bounds = array<i64: 1, 4, 16, 16>}]} {
    %cst = arith.constant 0.000000e+00 : bf16
    %0 = vector.broadcast %cst : bf16 to vector<6x1x8xbf16>
    %c0 = arith.constant 0 : index
    %c0_0 = arith.constant 0 : index
    %c0_1 = arith.constant 0 : index
    %1 = vector.load %arg9[%c0, %c0_0, %c0_1] : memref<6x18x8xbf16, #tpu.memory_space<vmem>>, vector<6x1x8xbf16>
    tpu.vector_store %arg9[%c0, %c0_0, %c0_1], %0 {strides = array<i32>} : memref<6x18x8xbf16, #tpu.memory_space<vmem>>, vector<6x1x8xbf16>,
    %c0_2 = arith.constant 0 : index
    %c17 = arith.constant 17 : index
    %c0_3 = arith.constant 0 : index
    %2 = vector.load %arg9[%c0_2, %c17, %c0_3] : memref<6x18x8xbf16, #tpu.memory_space<vmem>>, vector<6x1x8xbf16>
    tpu.vector_store %arg9[%c0_2, %c17, %c0_3], %0 {strides = array<i32>} : memref<6x18x8xbf16, #tpu.memory_space<vmem>>, vector<6x1x8xbf16>,
    %c0_4 = arith.constant 0 : index
    %c0_5 = arith.constant 0 : index
    %c0_6 = arith.constant 0 : index
    %c0_7 = arith.constant 0 : index
    %3 = vector.load %arg4[%c0_4, %c0_5, %c0_6, %c0_7] : memref<1x4x16x8xbf16, #tpu.memory_space<vmem>>, vector<1x4x16x8xbf16>
    %4 = vector.shape_cast %3 : vector<1x4x16x8xbf16> to vector<4x16x8xbf16>
    %c1 = arith.constant 1 : index
    %c1_8 = arith.constant 1 : index
    %c0_9 = arith.constant 0 : index
    %5 = vector.load %arg9[%c1, %c1_8, %c0_9] : memref<6x18x8xbf16, #tpu.memory_space<vmem>>, vector<4x16x8xbf16>
    tpu.vector_store %arg9[%c1, %c1_8, %c0_9], %4 {strides = array<i32>} : memref<6x18x8xbf16, #tpu.memory_space<vmem>>, vector<4x16x8xbf16>,
    %cst_10 = arith.constant 0.000000e+00 : bf16
    %6 = vector.broadcast %cst_10 : bf16 to vector<1x16x8xbf16>
    %c0_i32 = arith.constant 0 : i32
    %7 = arith.cmpi eq, %arg2, %c0_i32 : i32
    %8 = arith.extui %7 : i1 to i32
    %c0_i32_11 = arith.constant 0 : i32
    %9 = arith.cmpi ne, %8, %c0_i32_11 : i32
    scf.if %9 {
      %c0_80 = arith.constant 0 : index
      %c1_81 = arith.constant 1 : index
      %c0_82 = arith.constant 0 : index
      %82 = vector.load %arg9[%c0_80, %c1_81, %c0_82] : memref<6x18x8xbf16, #tpu.memory_space<vmem>>, vector<1x16x8xbf16>
      tpu.vector_store %arg9[%c0_80, %c1_81, %c0_82], %6 {strides = array<i32>} : memref<6x18x8xbf16, #tpu.memory_space<vmem>>, vector<1x16x8xbf16>,
    } else {
    }
    %c0_i32_12 = arith.constant 0 : i32
    %10 = arith.cmpi sgt, %arg2, %c0_i32_12 : i32
    %11 = arith.extui %10 : i1 to i32
    %c0_i32_13 = arith.constant 0 : i32
    %12 = arith.cmpi ne, %11, %c0_i32_13 : i32
    scf.if %12 {
      %c0_80 = arith.constant 0 : index
      %c0_81 = arith.constant 0 : index
      %c0_82 = arith.constant 0 : index
      %c0_83 = arith.constant 0 : index
      %82 = vector.load %arg3[%c0_80, %c0_81, %c0_82, %c0_83] : memref<1x1x16x8xbf16, #tpu.memory_space<vmem>>, vector<1x1x16x8xbf16>
      %83 = vector.shape_cast %82 : vector<1x1x16x8xbf16> to vector<1x16x8xbf16>
      %c0_84 = arith.constant 0 : index
      %c1_85 = arith.constant 1 : index
      %c0_86 = arith.constant 0 : index
      %84 = vector.load %arg9[%c0_84, %c1_85, %c0_86] : memref<6x18x8xbf16, #tpu.memory_space<vmem>>, vector<1x16x8xbf16>
      tpu.vector_store %arg9[%c0_84, %c1_85, %c0_86], %83 {strides = array<i32>} : memref<6x18x8xbf16, #tpu.memory_space<vmem>>, vector<1x16x8xbf16>,
    } else {
    }
    %c3_i32 = arith.constant 3 : i32
    %13 = arith.cmpi eq, %arg2, %c3_i32 : i32
    %14 = arith.extui %13 : i1 to i32
    %c0_i32_14 = arith.constant 0 : i32
    %15 = arith.cmpi ne, %14, %c0_i32_14 : i32
    scf.if %15 {
      %c5_80 = arith.constant 5 : index
      %c1_81 = arith.constant 1 : index
      %c0_82 = arith.constant 0 : index
      %82 = vector.load %arg9[%c5_80, %c1_81, %c0_82] : memref<6x18x8xbf16, #tpu.memory_space<vmem>>, vector<1x16x8xbf16>
      tpu.vector_store %arg9[%c5_80, %c1_81, %c0_82], %6 {strides = array<i32>} : memref<6x18x8xbf16, #tpu.memory_space<vmem>>, vector<1x16x8xbf16>,
    } else {
    }
    %c3_i32_15 = arith.constant 3 : i32
    %16 = arith.cmpi slt, %arg2, %c3_i32_15 : i32
    %17 = arith.extui %16 : i1 to i32
    %c0_i32_16 = arith.constant 0 : i32
    %18 = arith.cmpi ne, %17, %c0_i32_16 : i32
    scf.if %18 {
      %c0_80 = arith.constant 0 : index
      %c0_81 = arith.constant 0 : index
      %c0_82 = arith.constant 0 : index
      %c0_83 = arith.constant 0 : index
      %82 = vector.load %arg5[%c0_80, %c0_81, %c0_82, %c0_83] : memref<1x1x16x8xbf16, #tpu.memory_space<vmem>>, vector<1x1x16x8xbf16>
      %83 = vector.shape_cast %82 : vector<1x1x16x8xbf16> to vector<1x16x8xbf16>
      %c5_84 = arith.constant 5 : index
      %c1_85 = arith.constant 1 : index
      %c0_86 = arith.constant 0 : index
      %84 = vector.load %arg9[%c5_84, %c1_85, %c0_86] : memref<6x18x8xbf16, #tpu.memory_space<vmem>>, vector<1x16x8xbf16>
      tpu.vector_store %arg9[%c5_84, %c1_85, %c0_86], %83 {strides = array<i32>} : memref<6x18x8xbf16, #tpu.memory_space<vmem>>, vector<1x16x8xbf16>,
    } else {
    }
    %cst_17 = arith.constant 0.000000e+00 : f32
    %19 = vector.broadcast %cst_17 : f32 to vector<64x16xf32>
    %c0_18 = arith.constant 0 : index
    %c0_19 = arith.constant 0 : index
    %c0_20 = arith.constant 0 : index
    %20 = vector.load %arg9[%c0_18, %c0_19, %c0_20] : memref<6x18x8xbf16, #tpu.memory_space<vmem>>, vector<4x16x8xbf16>
    %21 = vector.shape_cast %20 : vector<4x16x8xbf16> to vector<64x8xbf16>
    %c0_21 = arith.constant 0 : index
    %c0_22 = arith.constant 0 : index
    %c0_23 = arith.constant 0 : index
    %22 = vector.load %arg6[%c0_21, %c0_22, %c0_23] : memref<9x8x16xbf16, #tpu.memory_space<vmem>>, vector<1x8x16xbf16>
    %23 = vector.shape_cast %22 : vector<1x8x16xbf16> to vector<8x16xbf16>
    %cst_24 = arith.constant dense<0.000000e+00> : vector<64x16xf32>
    %24 = tpu.matmul %21, %23, %cst_24 {dimension_numbers = #tpu.dot_dimension_numbers<[1], [0], [0], [1], [0, 0, 1, 1], [], []>} : vector<64x8xbf16>, vector<8x16xbf16>, vector<64x16xf32> -> vector<64x16xf32>
    %25 = arith.addf %19, %24 : vector<64x16xf32>
    %c0_25 = arith.constant 0 : index
    %c1_26 = arith.constant 1 : index
    %c0_27 = arith.constant 0 : index
    %26 = vector.load %arg9[%c0_25, %c1_26, %c0_27] : memref<6x18x8xbf16, #tpu.memory_space<vmem>>, vector<4x16x8xbf16>
    %27 = vector.shape_cast %26 : vector<4x16x8xbf16> to vector<64x8xbf16>
    %c1_28 = arith.constant 1 : index
    %c0_29 = arith.constant 0 : index
    %c0_30 = arith.constant 0 : index
    %28 = vector.load %arg6[%c1_28, %c0_29, %c0_30] : memref<9x8x16xbf16, #tpu.memory_space<vmem>>, vector<1x8x16xbf16>
    %29 = vector.shape_cast %28 : vector<1x8x16xbf16> to vector<8x16xbf16>
    %cst_31 = arith.constant dense<0.000000e+00> : vector<64x16xf32>
    %30 = tpu.matmul %27, %29, %cst_31 {dimension_numbers = #tpu.dot_dimension_numbers<[1], [0], [0], [1], [0, 0, 1, 1], [], []>} : vector<64x8xbf16>, vector<8x16xbf16>, vector<64x16xf32> -> vector<64x16xf32>
    %31 = arith.addf %25, %30 : vector<64x16xf32>
    %c0_32 = arith.constant 0 : index
    %c2 = arith.constant 2 : index
    %c0_33 = arith.constant 0 : index
    %32 = vector.load %arg9[%c0_32, %c2, %c0_33] : memref<6x18x8xbf16, #tpu.memory_space<vmem>>, vector<4x16x8xbf16>
    %33 = vector.shape_cast %32 : vector<4x16x8xbf16> to vector<64x8xbf16>
    %c2_34 = arith.constant 2 : index
    %c0_35 = arith.constant 0 : index
    %c0_36 = arith.constant 0 : index
    %34 = vector.load %arg6[%c2_34, %c0_35, %c0_36] : memref<9x8x16xbf16, #tpu.memory_space<vmem>>, vector<1x8x16xbf16>
    %35 = vector.shape_cast %34 : vector<1x8x16xbf16> to vector<8x16xbf16>
    %cst_37 = arith.constant dense<0.000000e+00> : vector<64x16xf32>
    %36 = tpu.matmul %33, %35, %cst_37 {dimension_numbers = #tpu.dot_dimension_numbers<[1], [0], [0], [1], [0, 0, 1, 1], [], []>} : vector<64x8xbf16>, vector<8x16xbf16>, vector<64x16xf32> -> vector<64x16xf32>
    %37 = arith.addf %31, %36 : vector<64x16xf32>
    %c1_38 = arith.constant 1 : index
    %c0_39 = arith.constant 0 : index
    %c0_40 = arith.constant 0 : index
    %38 = vector.load %arg9[%c1_38, %c0_39, %c0_40] : memref<6x18x8xbf16, #tpu.memory_space<vmem>>, vector<4x16x8xbf16>
    %39 = vector.shape_cast %38 : vector<4x16x8xbf16> to vector<64x8xbf16>
    %c3 = arith.constant 3 : index
    %c0_41 = arith.constant 0 : index
    %c0_42 = arith.constant 0 : index
    %40 = vector.load %arg6[%c3, %c0_41, %c0_42] : memref<9x8x16xbf16, #tpu.memory_space<vmem>>, vector<1x8x16xbf16>
    %41 = vector.shape_cast %40 : vector<1x8x16xbf16> to vector<8x16xbf16>
    %cst_43 = arith.constant dense<0.000000e+00> : vector<64x16xf32>
    %42 = tpu.matmul %39, %41, %cst_43 {dimension_numbers = #tpu.dot_dimension_numbers<[1], [0], [0], [1], [0, 0, 1, 1], [], []>} : vector<64x8xbf16>, vector<8x16xbf16>, vector<64x16xf32> -> vector<64x16xf32>
    %43 = arith.addf %37, %42 : vector<64x16xf32>
    %c1_44 = arith.constant 1 : index
    %c1_45 = arith.constant 1 : index
    %c0_46 = arith.constant 0 : index
    %44 = vector.load %arg9[%c1_44, %c1_45, %c0_46] : memref<6x18x8xbf16, #tpu.memory_space<vmem>>, vector<4x16x8xbf16>
    %45 = vector.shape_cast %44 : vector<4x16x8xbf16> to vector<64x8xbf16>
    %c4 = arith.constant 4 : index
    %c0_47 = arith.constant 0 : index
    %c0_48 = arith.constant 0 : index
    %46 = vector.load %arg6[%c4, %c0_47, %c0_48] : memref<9x8x16xbf16, #tpu.memory_space<vmem>>, vector<1x8x16xbf16>
    %47 = vector.shape_cast %46 : vector<1x8x16xbf16> to vector<8x16xbf16>
    %cst_49 = arith.constant dense<0.000000e+00> : vector<64x16xf32>
    %48 = tpu.matmul %45, %47, %cst_49 {dimension_numbers = #tpu.dot_dimension_numbers<[1], [0], [0], [1], [0, 0, 1, 1], [], []>} : vector<64x8xbf16>, vector<8x16xbf16>, vector<64x16xf32> -> vector<64x16xf32>
    %49 = arith.addf %43, %48 : vector<64x16xf32>
    %c1_50 = arith.constant 1 : index
    %c2_51 = arith.constant 2 : index
    %c0_52 = arith.constant 0 : index
    %50 = vector.load %arg9[%c1_50, %c2_51, %c0_52] : memref<6x18x8xbf16, #tpu.memory_space<vmem>>, vector<4x16x8xbf16>
    %51 = vector.shape_cast %50 : vector<4x16x8xbf16> to vector<64x8xbf16>
    %c5 = arith.constant 5 : index
    %c0_53 = arith.constant 0 : index
    %c0_54 = arith.constant 0 : index
    %52 = vector.load %arg6[%c5, %c0_53, %c0_54] : memref<9x8x16xbf16, #tpu.memory_space<vmem>>, vector<1x8x16xbf16>
    %53 = vector.shape_cast %52 : vector<1x8x16xbf16> to vector<8x16xbf16>
    %cst_55 = arith.constant dense<0.000000e+00> : vector<64x16xf32>
    %54 = tpu.matmul %51, %53, %cst_55 {dimension_numbers = #tpu.dot_dimension_numbers<[1], [0], [0], [1], [0, 0, 1, 1], [], []>} : vector<64x8xbf16>, vector<8x16xbf16>, vector<64x16xf32> -> vector<64x16xf32>
    %55 = arith.addf %49, %54 : vector<64x16xf32>
    %c2_56 = arith.constant 2 : index
    %c0_57 = arith.constant 0 : index
    %c0_58 = arith.constant 0 : index
    %56 = vector.load %arg9[%c2_56, %c0_57, %c0_58] : memref<6x18x8xbf16, #tpu.memory_space<vmem>>, vector<4x16x8xbf16>
    %57 = vector.shape_cast %56 : vector<4x16x8xbf16> to vector<64x8xbf16>
    %c6 = arith.constant 6 : index
    %c0_59 = arith.constant 0 : index
    %c0_60 = arith.constant 0 : index
    %58 = vector.load %arg6[%c6, %c0_59, %c0_60] : memref<9x8x16xbf16, #tpu.memory_space<vmem>>, vector<1x8x16xbf16>
    %59 = vector.shape_cast %58 : vector<1x8x16xbf16> to vector<8x16xbf16>
    %cst_61 = arith.constant dense<0.000000e+00> : vector<64x16xf32>
    %60 = tpu.matmul %57, %59, %cst_61 {dimension_numbers = #tpu.dot_dimension_numbers<[1], [0], [0], [1], [0, 0, 1, 1], [], []>} : vector<64x8xbf16>, vector<8x16xbf16>, vector<64x16xf32> -> vector<64x16xf32>
    %61 = arith.addf %55, %60 : vector<64x16xf32>
    %c2_62 = arith.constant 2 : index
    %c1_63 = arith.constant 1 : index
    %c0_64 = arith.constant 0 : index
    %62 = vector.load %arg9[%c2_62, %c1_63, %c0_64] : memref<6x18x8xbf16, #tpu.memory_space<vmem>>, vector<4x16x8xbf16>
    %63 = vector.shape_cast %62 : vector<4x16x8xbf16> to vector<64x8xbf16>
    %c7 = arith.constant 7 : index
    %c0_65 = arith.constant 0 : index
    %c0_66 = arith.constant 0 : index
    %64 = vector.load %arg6[%c7, %c0_65, %c0_66] : memref<9x8x16xbf16, #tpu.memory_space<vmem>>, vector<1x8x16xbf16>
    %65 = vector.shape_cast %64 : vector<1x8x16xbf16> to vector<8x16xbf16>
    %cst_67 = arith.constant dense<0.000000e+00> : vector<64x16xf32>
    %66 = tpu.matmul %63, %65, %cst_67 {dimension_numbers = #tpu.dot_dimension_numbers<[1], [0], [0], [1], [0, 0, 1, 1], [], []>} : vector<64x8xbf16>, vector<8x16xbf16>, vector<64x16xf32> -> vector<64x16xf32>
    %67 = arith.addf %61, %66 : vector<64x16xf32>
    %c2_68 = arith.constant 2 : index
    %c2_69 = arith.constant 2 : index
    %c0_70 = arith.constant 0 : index
    %68 = vector.load %arg9[%c2_68, %c2_69, %c0_70] : memref<6x18x8xbf16, #tpu.memory_space<vmem>>, vector<4x16x8xbf16>
    %69 = vector.shape_cast %68 : vector<4x16x8xbf16> to vector<64x8xbf16>
    %c8 = arith.constant 8 : index
    %c0_71 = arith.constant 0 : index
    %c0_72 = arith.constant 0 : index
    %70 = vector.load %arg6[%c8, %c0_71, %c0_72] : memref<9x8x16xbf16, #tpu.memory_space<vmem>>, vector<1x8x16xbf16>
    %71 = vector.shape_cast %70 : vector<1x8x16xbf16> to vector<8x16xbf16>
    %cst_73 = arith.constant dense<0.000000e+00> : vector<64x16xf32>
    %72 = tpu.matmul %69, %71, %cst_73 {dimension_numbers = #tpu.dot_dimension_numbers<[1], [0], [0], [1], [0, 0, 1, 1], [], []>} : vector<64x8xbf16>, vector<8x16xbf16>, vector<64x16xf32> -> vector<64x16xf32>
    %73 = arith.addf %67, %72 : vector<64x16xf32>
    %c0_74 = arith.constant 0 : index
    %c0_75 = arith.constant 0 : index
    %74 = vector.load %arg7[%c0_74, %c0_75] : memref<1x16xf32, #tpu.memory_space<vmem>>, vector<1x16xf32>
    %75 = vector.broadcast %74 : vector<1x16xf32> to vector<64x16xf32>
    %76 = arith.addf %73, %75 : vector<64x16xf32>
    %77 = vector.shape_cast %76 : vector<64x16xf32> to vector<4x16x16xf32>
    %78 = arith.truncf %77 : vector<4x16x16xf32> to vector<4x16x16xbf16>
    %c0_76 = arith.constant 0 : index
    %c0_77 = arith.constant 0 : index
    %c0_78 = arith.constant 0 : index
    %c0_79 = arith.constant 0 : index
    %79 = vector.load %arg8[%c0_76, %c0_77, %c0_78, %c0_79] : memref<1x4x16x16xbf16, #tpu.memory_space<vmem>>, vector<1x4x16x16xbf16>
    %80 = vector.shape_cast %79 : vector<1x4x16x16xbf16> to vector<4x16x16xbf16>
    %81 = vector.shape_cast %78 : vector<4x16x16xbf16> to vector<1x4x16x16xbf16>
    tpu.vector_store %arg8[%c0_76, %c0_77, %c0_78, %c0_79], %81 {strides = array<i32>} : memref<1x4x16x16xbf16, #tpu.memory_space<vmem>>, vector<1x4x16x16xbf16>,
    return
  }
  func.func @transform_0(%arg0: i32, %arg1: i32, %arg2: i32) -> (i32, i32, i32, i32) {
    %c4_i32 = arith.constant 4 : i32
    %0 = arith.muli %arg2, %c4_i32 : i32
    %c1_i32 = arith.constant 1 : i32
    %1 = arith.subi %0, %c1_i32 : i32
    %c0_i32 = arith.constant 0 : i32
    %2 = arith.maxsi %1, %c0_i32 : i32
    %c0_i32_0 = arith.constant 0 : i32
    %c0_i32_1 = arith.constant 0 : i32
    %c0_i32_2 = arith.constant 0 : i32
    return %arg1, %2, %c0_i32_0, %c0_i32_1 : i32, i32, i32, i32
  }
  func.func @transform_1(%arg0: i32, %arg1: i32, %arg2: i32) -> (i32, i32, i32, i32) {
    %c0_i32 = arith.constant 0 : i32
    %c0_i32_0 = arith.constant 0 : i32
    %c0_i32_1 = arith.constant 0 : i32
    return %arg1, %arg2, %c0_i32, %c0_i32_0 : i32, i32, i32, i32
  }
  func.func @transform_2(%arg0: i32, %arg1: i32, %arg2: i32) -> (i32, i32, i32, i32) {
    %c1_i32 = arith.constant 1 : i32
    %0 = arith.addi %arg2, %c1_i32 : i32
    %c4_i32 = arith.constant 4 : i32
    %1 = arith.muli %0, %c4_i32 : i32
    %c15_i32 = arith.constant 15 : i32
    %2 = arith.minsi %1, %c15_i32 : i32
    %c0_i32 = arith.constant 0 : i32
    %c0_i32_0 = arith.constant 0 : i32
    %c0_i32_1 = arith.constant 0 : i32
    return %arg1, %2, %c0_i32, %c0_i32_0 : i32, i32, i32, i32
  }
  func.func @transform_3(%arg0: i32, %arg1: i32, %arg2: i32) -> (i32, i32, i32) {
    %c0_i32 = arith.constant 0 : i32
    %c0_i32_0 = arith.constant 0 : i32
    %c0_i32_1 = arith.constant 0 : i32
    return %c0_i32, %c0_i32_0, %arg0 : i32, i32, i32
  }
  func.func @transform_4(%arg0: i32, %arg1: i32, %arg2: i32) -> (i32, i32) {
    %c0_i32 = arith.constant 0 : i32
    %c0_i32_0 = arith.constant 0 : i32
    return %c0_i32, %arg0 : i32, i32
  }
  func.func @transform_5(%arg0: i32, %arg1: i32, %arg2: i32) -> (i32, i32, i32, i32) {
    %c0_i32 = arith.constant 0 : i32
    %c0_i32_0 = arith.constant 0 : i32
    return %arg1, %arg2, %c0_i32, %arg0 : i32, i32, i32, i32
  }
}

</mosaic_0001>

<llo_original>
// kernel: tpu_custom_call.1
$region0: #{tpu_custom_call.1}
  #allocation0 [shape = 'u32[]', space=smem, size = 0x4, offset = 0x4, fixed_abs, tag = 'smem constant byte address 0x4 - core index']
  #allocation1 [shape = 'u32[144,128]{1,0:T(1,128)}', space=vmem, size = 0x12000, scoped, tag = 'internal scratch']
  #allocation2 [shape = 'bf16[6,18,8]{2,1,0:T(8,128)(2,1)}', space=vmem, size = 0x9000, scoped, tag = 'scratch operand']
  %s0 = inlined_call_operand.vmem [shape: bf16[1,16,16,8], index: 0, kind: input, shape index: {}]
  %s1 = inlined_call_operand.vmem [shape: bf16[1,16,16,8], index: 1, kind: input, shape index: {}]
  %s2 = inlined_call_operand.vmem [shape: bf16[1,16,16,8], index: 2, kind: input, shape index: {}]
  %s3 = inlined_call_operand.vmem [shape: bf16[9,8,16], index: 3, kind: input, shape index: {}]
  %s4 = inlined_call_operand.vmem [shape: f32[1,16], index: 4, kind: input, shape index: {}]
  %s5 = inlined_call_operand.hbm [shape: bf16[1,16,16,16], index: 5, kind: output, shape index: {}]
  %s6 = sld [smem:[#allocation0]]
  $region69: #{tpu_custom_call.1} parent=0
    _
  %s8 = ssub.s32 1, %s6
  %s9 = scalar_select 0, %s8, %s6
  $region1: #{tpu_custom_call.1} parent=0
    #allocation3 [shape = 'u8[32768]{0}', space=vmem, size = 0x8000, scoped, tag = 'output window, operand 0']
    #allocation4 [shape = 's32[2]{0}', space=sflag, size = 0x8, scoped, tag = 'scoped memory for tpu_custom_call.1']
    %10 = vsyncpa [#allocation4], 0
    %s11 = scalar_lea.sflag [#allocation4], 1
    %12 = vsyncpa %s11, 0
    loop: start=0, step=1, limit=6
    $region2: #{tpu_custom_call.1} parent=1 // loop_pre_header
      _
    $region3: #{tpu_custom_call.1} parent=1 // loop_header
      %s14 = sphi 0, %s18
      %p15 = scmp.ge.s32.totalorder %s14, 6
      %s21 = sphi 0, %s40
      %s22 = sphi 0, %s36
      %s23 = sphi 0, %s32
      %s24 = sphi 0, %s21
      %s25 = sphi 0, %s22
      %s26 = sphi 0, %s23
      %s27 = sphi 0, %s24
      %s28 = sphi 0, %s25
      %s29 = sphi 0, %s26
      %s53 = sphi 0, %s55
      %s56 = sphi 0, %s53
      %s57 = sphi 0, %s56
      %s73 = sphi 0, %s57
      %s81 = sphi 0, %s83
      %s84 = sphi 0, %s81
      %s85 = sphi 0, %s84
      %s101 = sphi 0, %s85
      %s117 = sphi 0, %s119
      %s120 = sphi 0, %s117
      %s121 = sphi 0, %s120
      %s137 = sphi 0, %s121
      %s143 = sphi 0, %s145
      %s146 = sphi 0, %s143
      %s147 = sphi 0, %s146
      %s163 = sphi 0, %s147
      %s169 = sphi 0, %s171
      %s172 = sphi 0, %s169
      %s173 = sphi 0, %s172
      %s189 = sphi 0, %s173
      %s199 = sphi 0, %s201
      %s202 = sphi 0, %s199
      %s203 = sphi 0, %s202
      %s219 = sphi 0, %s203
    $region4: #{tpu_custom_call.1} parent=1 // loop_header_branch
      %17 = sbr.rel (%p15) target = $region8
    $region5: #{tpu_custom_call.1} parent=1 // loop_body
      %s19 = ssub.s32 %s14, 1
      %s20 = ssub.s32 %s14, 2
      %s30 = sadd.s32 1, %s23
      %p31 = scmp.ge.s32.totalorder %s30, 4
      %s32 = scalar_select %p31, 0, %s30
      %s33 = sadd.s32 1, %s22
      %s34 = scalar_select %p31, %s33, %s22
      %p35 = scmp.ge.s32.totalorder %s34, 1
      %s36 = scalar_select %p35, 0, %s34
      %s37 = sadd.s32 1, %s21
      %s38 = scalar_select %p35, %s37, %s21
      %p39 = scmp.ge.s32.totalorder %s38, 1
      %s40 = scalar_select %p39, 0, %s38
      %s41 = smul.u32 %s23, 4
      %s42 = ssub.s32 %s41, 1
      %p43 = scmp.gt.s32.totalorder %s42, 0
      %s44 = scalar_select %p43, %s42, 0
      %s45 = smul.u32 %s32, 4
      %s46 = ssub.s32 %s45, 1
      %p47 = scmp.gt.s32.totalorder %s46, 0
      %s48 = scalar_select %p47, %s46, 0
      %s49 = ssub.s32 %s22, %s36
      %s50 = ssub.s32 %s44, %s48
      %s51 = sor.u32 %s49, %s50
      %p52 = scmp.eq.s32.totalorder %s51, 0
      %s54 = sadd.s32 %s53, 1
      %s55 = scalar_select %p52, %s53, %s54
      %p58 = pneg %p52
      %p59 = scmp.eq.s32.totalorder %s14, 3
      %p60 = por %p58, %p59
      %p61 = scmp.ne.s32.totalorder %s53, %s56
      %p62 = scmp.eq.s32.totalorder %s14, 0
      %p63 = por %p61, %p62
      %p64 = scmp.ne.s32.totalorder %s53, %s56
      %p65 = scmp.eq.s32.totalorder %s19, 3
      %p66 = por %p64, %p65
      %p67 = scmp.ne.s32.totalorder %s56, %s57
      %p68 = scmp.eq.s32.totalorder %s19, 0
      %p69 = por %p67, %p68
      %p70 = scmp.ne.s32.totalorder %s56, %s57
      %p71 = scmp.eq.s32.totalorder %s20, 3
      %p72 = por %p70, %p71
      %p74 = scmp.ne.s32.totalorder %s57, %s73
      %p75 = scmp.eq.s32.totalorder %s20, 0
      %p76 = por %p74, %p75
      %s77 = ssub.s32 %s22, %s36
      %s78 = ssub.s32 %s23, %s32
      %s79 = sor.u32 %s77, %s78
      %p80 = scmp.eq.s32.totalorder %s79, 0
      %s82 = sadd.s32 %s81, 1
      %s83 = scalar_select %p80, %s81, %s82
      %p86 = pneg %p80
      %p87 = scmp.eq.s32.totalorder %s14, 3
      %p88 = por %p86, %p87
      %p89 = scmp.ne.s32.totalorder %s81, %s84
      %p90 = scmp.eq.s32.totalorder %s14, 0
      %p91 = por %p89, %p90
      %p92 = scmp.ne.s32.totalorder %s81, %s84
      %p93 = scmp.eq.s32.totalorder %s19, 3
      %p94 = por %p92, %p93
      %p95 = scmp.ne.s32.totalorder %s84, %s85
      %p96 = scmp.eq.s32.totalorder %s19, 0
      %p97 = por %p95, %p96
      %p98 = scmp.ne.s32.totalorder %s84, %s85
      %p99 = scmp.eq.s32.totalorder %s20, 3
      %p100 = por %p98, %p99
      %p102 = scmp.ne.s32.totalorder %s85, %s101
      %p103 = scmp.eq.s32.totalorder %s20, 0
      %p104 = por %p102, %p103
      %s105 = sadd.s32 %s23, 1
      %s106 = smul.u32 %s105, 4
      %p107 = scmp.lt.s32.totalorder %s106, 15
      %s108 = scalar_select %p107, %s106, 15
      %s109 = sadd.s32 %s32, 1
      %s110 = smul.u32 %s109, 4
      %p111 = scmp.lt.s32.totalorder %s110, 15
      %s112 = scalar_select %p111, %s110, 15
      %s113 = ssub.s32 %s22, %s36
      %s114 = ssub.s32 %s108, %s112
      %s115 = sor.u32 %s113, %s114
      %p116 = scmp.eq.s32.totalorder %s115, 0
      %s118 = sadd.s32 %s117, 1
      %s119 = scalar_select %p116, %s117, %s118
      %p122 = pneg %p116
      %p123 = scmp.eq.s32.totalorder %s14, 3
      %p124 = por %p122, %p123
      %p125 = scmp.ne.s32.totalorder %s117, %s120
      %p126 = scmp.eq.s32.totalorder %s14, 0
      %p127 = por %p125, %p126
      %p128 = scmp.ne.s32.totalorder %s117, %s120
      %p129 = scmp.eq.s32.totalorder %s19, 3
      %p130 = por %p128, %p129
      %p131 = scmp.ne.s32.totalorder %s120, %s121
      %p132 = scmp.eq.s32.totalorder %s19, 0
      %p133 = por %p131, %p132
      %p134 = scmp.ne.s32.totalorder %s120, %s121
      %p135 = scmp.eq.s32.totalorder %s20, 3
      %p136 = por %p134, %p135
      %p138 = scmp.ne.s32.totalorder %s121, %s137
      %p139 = scmp.eq.s32.totalorder %s20, 0
      %p140 = por %p138, %p139
      %s141 = ssub.s32 %s21, %s40
      %p142 = scmp.eq.s32.totalorder %s141, 0
      %s144 = sadd.s32 %s143, 1
      %s145 = scalar_select %p142, %s143, %s144
      %p148 = pneg %p142
      %p149 = scmp.eq.s32.totalorder %s14, 3
      %p150 = por %p148, %p149
      %p151 = scmp.ne.s32.totalorder %s143, %s146
      %p152 = scmp.eq.s32.totalorder %s14, 0
      %p153 = por %p151, %p152
      %p154 = scmp.ne.s32.totalorder %s143, %s146
      %p155 = scmp.eq.s32.totalorder %s19, 3
      %p156 = por %p154, %p155
      %p157 = scmp.ne.s32.totalorder %s146, %s147
      %p158 = scmp.eq.s32.totalorder %s19, 0
      %p159 = por %p157, %p158
      %p160 = scmp.ne.s32.totalorder %s146, %s147
      %p161 = scmp.eq.s32.totalorder %s20, 3
      %p162 = por %p160, %p161
      %p164 = scmp.ne.s32.totalorder %s147, %s163
      %p165 = scmp.eq.s32.totalorder %s20, 0
      %p166 = por %p164, %p165
      %s167 = ssub.s32 %s21, %s40
      %p168 = scmp.eq.s32.totalorder %s167, 0
      %s170 = sadd.s32 %s169, 1
      %s171 = scalar_select %p168, %s169, %s170
      %p174 = pneg %p168
      %p175 = scmp.eq.s32.totalorder %s14, 3
      %p176 = por %p174, %p175
      %p177 = scmp.ne.s32.totalorder %s169, %s172
      %p178 = scmp.eq.s32.totalorder %s14, 0
      %p179 = por %p177, %p178
      %p180 = scmp.ne.s32.totalorder %s169, %s172
      %p181 = scmp.eq.s32.totalorder %s19, 3
      %p182 = por %p180, %p181
      %p183 = scmp.ne.s32.totalorder %s172, %s173
      %p184 = scmp.eq.s32.totalorder %s19, 0
      %p185 = por %p183, %p184
      %p186 = scmp.ne.s32.totalorder %s172, %s173
      %p187 = scmp.eq.s32.totalorder %s20, 3
      %p188 = por %p186, %p187
      %p190 = scmp.ne.s32.totalorder %s173, %s189
      %p191 = scmp.eq.s32.totalorder %s20, 0
      %p192 = por %p190, %p191
      %s193 = ssub.s32 %s22, %s36
      %s194 = ssub.s32 %s23, %s32
      %s195 = sor.u32 %s193, %s194
      %s196 = ssub.s32 %s21, %s40
      %s197 = sor.u32 %s195, %s196
      %p198 = scmp.eq.s32.totalorder %s197, 0
      %s200 = sadd.s32 %s199, 1
      %s201 = scalar_select %p198, %s199, %s200
      %p204 = pneg %p198
      %p205 = scmp.eq.s32.totalorder %s14, 3
      %p206 = por %p204, %p205
      %p207 = scmp.ne.s32.totalorder %s199, %s202
      %p208 = scmp.eq.s32.totalorder %s14, 0
      %p209 = por %p207, %p208
      %p210 = scmp.ne.s32.totalorder %s199, %s202
      %p211 = scmp.eq.s32.totalorder %s19, 3
      %p212 = por %p210, %p211
      %p213 = scmp.ne.s32.totalorder %s202, %s203
      %p214 = scmp.eq.s32.totalorder %s19, 0
      %p215 = por %p213, %p214
      %p216 = scmp.ne.s32.totalorder %s202, %s203
      %p217 = scmp.eq.s32.totalorder %s20, 3
      %p218 = por %p216, %p217
      %p220 = scmp.ne.s32.totalorder %s203, %s219
      %p221 = scmp.eq.s32.totalorder %s20, 0
      %p222 = por %p220, %p221
      %p223 = scmp.le.s32.totalorder 1, %s14
      %p224 = scmp.lt.s32.totalorder %s14, 5
      %p225 = pnand %p223, %p224
      %p226 = pneg %p225
      // Predicated region
      $region9: #{tpu_custom_call.1} parent=5 // pred_check
        _
      $region10: #{tpu_custom_call.1} parent=5 // pred_check_branch
        %228 = sbr.rel (%p225) target = $region12
      $region11: #{tpu_custom_call.1} parent=5 // pred_region
        %s229 = ssub.s32 %s14, 1
        // Predicated region
        $region13: #{tpu_custom_call.1} parent=11 // pred_check
          %p230 = pneg %p159
        $region14: #{tpu_custom_call.1} parent=11 // pred_check_branch
          %232 = sbr.rel (%p230) target = $region16
        $region15: #{tpu_custom_call.1} parent=11 // pred_region
          %p233 = scmp.lt.s32.totalorder %s24, 0
          %s234 = scalar_select %p233, %s24, 0
          %s235 = smul.addr %s234, 4
          %s236 = scalar_lea.vmem %s3, %s235
        $region16: #{tpu_custom_call.1} parent=11 // pred_fallthru
          _
        // Predicated region
        $region17: #{tpu_custom_call.1} parent=11 // pred_check
          %p237 = pneg %p185
        $region18: #{tpu_custom_call.1} parent=11 // pred_check_branch
          %239 = sbr.rel (%p237) target = $region20
        $region19: #{tpu_custom_call.1} parent=11 // pred_region
          %p240 = scmp.lt.s32.totalorder %s24, 0
          %s241 = scalar_select %p240, %s24, 0
          %s242 = scalar_lea.vmem %s4, %s241
        $region20: #{tpu_custom_call.1} parent=11 // pred_fallthru
          _
      $region12: #{tpu_custom_call.1} parent=5 // pred_fallthru
        _
      %p243 = scmp.lt.s32.totalorder %s14, 4
      // Predicated region
      $region21: #{tpu_custom_call.1} parent=5 // pred_check
        %p244 = pneg %p243
      $region22: #{tpu_custom_call.1} parent=5 // pred_check_branch
        %246 = sbr.rel (%p244) target = $region24
      $region23: #{tpu_custom_call.1} parent=5 // pred_region
        // Predicated region
        $region25: #{tpu_custom_call.1} parent=23 // pred_check
          %p247 = pneg %p63
        $region26: #{tpu_custom_call.1} parent=23 // pred_check_branch
          %249 = sbr.rel (%p247) target = $region28
        $region27: #{tpu_custom_call.1} parent=23 // pred_region
          %s250 = smul.u32 %s23, 4
          %s251 = ssub.s32 %s250, 1
          %p252 = scmp.gt.s32.totalorder %s251, 0
          %s253 = scalar_select %p252, %s251, 0
          %p254 = scmp.lt.s32.totalorder %s22, 0
          %s255 = scalar_select %p254, %s22, 0
          %p256 = scmp.lt.s32.totalorder %s253, 15
          %s257 = scalar_select %p256, %s253, 15
          %s258 = smul.addr %s257, 2
          %s259 = smul.addr %s255, 32
          %s260 = sadd.s32 %s258, %s259
          %s261 = smul.addr %s260, 4
          %s262 = scalar_lea.vmem %s0, %s261
          %s263 = smul.u32 %s23, 4
          %s264 = ssub.s32 %s263, 1
          %p265 = scmp.gt.s32.totalorder %s264, 0
          %s266 = scalar_select %p265, %s264, 0
        $region28: #{tpu_custom_call.1} parent=23 // pred_fallthru
          _
        // Predicated region
        $region29: #{tpu_custom_call.1} parent=23 // pred_check
          %p267 = pneg %p91
        $region30: #{tpu_custom_call.1} parent=23 // pred_check_branch
          %269 = sbr.rel (%p267) target = $region32
        $region31: #{tpu_custom_call.1} parent=23 // pred_region
          %s270 = smul.u32 4, %s23
          %p271 = scmp.lt.s32.totalorder %s22, 0
          %s272 = scalar_select %p271, %s22, 0
          %p273 = scmp.lt.s32.totalorder %s270, 15
          %s274 = scalar_select %p273, %s270, 15
          %s275 = smul.addr %s274, 2
          %s276 = smul.addr %s272, 32
          %s277 = sadd.s32 %s275, %s276
          %s278 = smul.addr %s277, 4
          %s279 = scalar_lea.vmem %s1, %s278
          %s280 = smul.u32 4, %s23
        $region32: #{tpu_custom_call.1} parent=23 // pred_fallthru
          _
        // Predicated region
        $region33: #{tpu_custom_call.1} parent=23 // pred_check
          %p281 = pneg %p127
        $region34: #{tpu_custom_call.1} parent=23 // pred_check_branch
          %283 = sbr.rel (%p281) target = $region36
        $region35: #{tpu_custom_call.1} parent=23 // pred_region
          %s284 = sadd.s32 %s23, 1
          %s285 = smul.u32 %s284, 4
          %p286 = scmp.lt.s32.totalorder %s285, 15
          %s287 = scalar_select %p286, %s285, 15
          %p288 = scmp.lt.s32.totalorder %s22, 0
          %s289 = scalar_select %p288, %s22, 0
          %p290 = scmp.lt.s32.totalorder %s287, 15
          %s291 = scalar_select %p290, %s287, 15
          %s292 = smul.addr %s291, 2
          %s293 = smul.addr %s289, 32
          %s294 = sadd.s32 %s292, %s293
          %s295 = smul.addr %s294, 4
          %s296 = scalar_lea.vmem %s2, %s295
          %s297 = sadd.s32 %s23, 1
          %s298 = smul.u32 %s297, 4
          %p299 = scmp.lt.s32.totalorder %s298, 15
          %s300 = scalar_select %p299, %s298, 15
        $region36: #{tpu_custom_call.1} parent=23 // pred_fallthru
          _
      $region24: #{tpu_custom_call.1} parent=5 // pred_fallthru
        _
      %p301 = scmp.le.s32.totalorder 1, %s14
      %p302 = scmp.lt.s32.totalorder %s14, 5
      %p303 = pnand %p301, %p302
      %p304 = pneg %p303
      // Predicated region
      $region37: #{tpu_custom_call.1} parent=5 // pred_check
        _
      $region38: #{tpu_custom_call.1} parent=5 // pred_check_branch
        %306 = sbr.rel (%p303) target = $region40
      $region39: #{tpu_custom_call.1} parent=5 // pred_region
        %s307 = ssub.s32 %s14, 1
        %s308 = smul.u32 %s26, 4
        %s309 = ssub.s32 %s308, 1
        %p310 = scmp.gt.s32.totalorder %s309, 0
        %s311 = scalar_select %p310, %s309, 0
        %p312 = scmp.lt.s32.totalorder %s25, 0
        %s313 = scalar_select %p312, %s25, 0
        %p314 = scmp.lt.s32.totalorder %s311, 15
        %s315 = scalar_select %p314, %s311, 15
        %s316 = smul.addr %s315, 2
        %s317 = smul.addr %s313, 32
        %s318 = sadd.s32 %s316, %s317
        %s319 = smul.addr %s318, 4
        %s320 = scalar_lea.vmem %s0, %s319
        %p321 = pneg %p69
        %p322 = pneg %p66
        %s323 = smul.u32 4, %s26
        %p324 = scmp.lt.s32.totalorder %s25, 0
        %s325 = scalar_select %p324, %s25, 0
        %p326 = scmp.lt.s32.totalorder %s323, 15
        %s327 = scalar_select %p326, %s323, 15
        %s328 = smul.addr %s327, 2
        %s329 = smul.addr %s325, 32
        %s330 = sadd.s32 %s328, %s329
        %s331 = smul.addr %s330, 4
        %s332 = scalar_lea.vmem %s1, %s331
        %p333 = pneg %p97
        %p334 = pneg %p94
        %s335 = sadd.s32 %s26, 1
        %s336 = smul.u32 %s335, 4
        %p337 = scmp.lt.s32.totalorder %s336, 15
        %s338 = scalar_select %p337, %s336, 15
        %p339 = scmp.lt.s32.totalorder %s25, 0
        %s340 = scalar_select %p339, %s25, 0
        %p341 = scmp.lt.s32.totalorder %s338, 15
        %s342 = scalar_select %p341, %s338, 15
        %s343 = smul.addr %s342, 2
        %s344 = smul.addr %s340, 32
        %s345 = sadd.s32 %s343, %s344
        %s346 = smul.addr %s345, 4
        %s347 = scalar_lea.vmem %s2, %s346
        %p348 = pneg %p133
        %p349 = pneg %p130
        %p350 = scmp.lt.s32.totalorder %s24, 0
        %s351 = scalar_select %p350, %s24, 0
        %s352 = smul.addr %s351, 4
        %s353 = scalar_lea.vmem %s3, %s352
        %p354 = pneg %p159
        %p355 = pneg %p156
        %p356 = scmp.lt.s32.totalorder %s24, 0
        %s357 = scalar_select %p356, %s24, 0
        %s358 = scalar_lea.vmem %s4, %s357
        %p359 = pneg %p185
        %p360 = pneg %p182
        %p361 = pneg %p215
        %p362 = pneg %p212
        %s363 = sand.u32 %s202, 1
        %s364 = scalar_lea.sflag [#allocation4], %s363
        %s365 = sand.u32 %s202, 1
        %s366 = smul.addr %s365, 32
        %s367 = scalar_lea.vmem [#allocation3], %s366
        %s368 = smul.u32 %s26, 4
        %s369 = ssub.s32 %s368, 1
        %p370 = scmp.gt.s32.totalorder %s369, 0
        %s371 = scalar_select %p370, %s369, 0
        %p372 = scmp.lt.s32.totalorder %s25, 0
        %s373 = scalar_select %p372, %s25, 0
        %p374 = scmp.lt.s32.totalorder %s371, 15
        %s375 = scalar_select %p374, %s371, 15
        %s376 = smul.addr %s375, 2
        %s377 = smul.addr %s373, 32
        %s378 = sadd.s32 %s376, %s377
        %s379 = smul.addr %s378, 4
        %s380 = scalar_lea.vmem %s0, %s379
        %s381 = smul.u32 %s26, 4
        %s382 = ssub.s32 %s381, 1
        %p383 = scmp.gt.s32.totalorder %s382, 0
        %s384 = scalar_select %p383, %s382, 0
        %s385 = smul.u32 4, %s26
        %p386 = scmp.lt.s32.totalorder %s25, 0
        %s387 = scalar_select %p386, %s25, 0
        %p388 = scmp.lt.s32.totalorder %s385, 15
        %s389 = scalar_select %p388, %s385, 15
        %s390 = smul.addr %s389, 2
        %s391 = smul.addr %s387, 32
        %s392 = sadd.s32 %s390, %s391
        %s393 = smul.addr %s392, 4
        %s394 = scalar_lea.vmem %s1, %s393
        %s395 = smul.u32 4, %s26
        %s396 = sadd.s32 %s26, 1
        %s397 = smul.u32 %s396, 4
        %p398 = scmp.lt.s32.totalorder %s397, 15
        %s399 = scalar_select %p398, %s397, 15
        %p400 = scmp.lt.s32.totalorder %s25, 0
        %s401 = scalar_select %p400, %s25, 0
        %p402 = scmp.lt.s32.totalorder %s399, 15
        %s403 = scalar_select %p402, %s399, 15
        %s404 = smul.addr %s403, 2
        %s405 = smul.addr %s401, 32
        %s406 = sadd.s32 %s404, %s405
        %s407 = smul.addr %s406, 4
        %s408 = scalar_lea.vmem %s2, %s407
        %s409 = sadd.s32 %s26, 1
        %s410 = smul.u32 %s409, 4
        %p411 = scmp.lt.s32.totalorder %s410, 15
        %s412 = scalar_select %p411, %s410, 15
        %p413 = scmp.lt.s32.totalorder %s24, 0
        %s414 = scalar_select %p413, %s24, 0
        %s415 = smul.addr %s414, 4
        %s416 = scalar_lea.vmem %s3, %s415
        %p417 = scmp.lt.s32.totalorder %s24, 0
        %s418 = scalar_select %p417, %s24, 0
        %s419 = scalar_lea.vmem %s4, %s418
        %s420 = smul.u32 4, %s26
        %vm422 = vcmask 57344
        %vm423 = vsmask.f32 256
        %vm424 = vmand %vm422, %vm423
        %v425 = vld [vmem:[#allocation2] sm:$0x1]
        %v426 = vsel %vm424, 0, %v425
        %427 = vst [vmem:[#allocation2] sm:$0x1] %v426
        %v428 = vld [vmem:[#allocation2 + $0xc] sm:$0x1]
        %v429 = vsel %vm424, 0, %v428
        %430 = vst [vmem:[#allocation2 + $0xc] sm:$0x1] %v429
        %v431 = vld [vmem:[#allocation2 + $0x18] sm:$0x1]
        %v432 = vsel %vm424, 0, %v431
        %433 = vst [vmem:[#allocation2 + $0x18] sm:$0x1] %v432
        %v434 = vld [vmem:[#allocation2 + $0x24] sm:$0x1]
        %v435 = vsel %vm424, 0, %v434
        %436 = vst [vmem:[#allocation2 + $0x24] sm:$0x1] %v435
        %v437 = vld [vmem:[#allocation2 + $0x30] sm:$0x1]
        %v438 = vsel %vm424, 0, %v437
        %439 = vst [vmem:[#allocation2 + $0x30] sm:$0x1] %v438
        %v440 = vld [vmem:[#allocation2 + $0x3c] sm:$0x1]
        %v441 = vsel %vm424, 0, %v440
        %442 = vst [vmem:[#allocation2 + $0x3c] sm:$0x1] %v441
        %vm443 = vsmask.f32 7938
        %vm444 = vmand %vm422, %vm443
        %v445 = vld [vmem:[#allocation2 + $0x8] sm:$0x1]
        %v446 = vsel %vm444, 0, %v445
        %447 = vst [vmem:[#allocation2 + $0x8] sm:$0x1] %v446
        %v448 = vld [vmem:[#allocation2 + $0x14] sm:$0x1]
        %v449 = vsel %vm444, 0, %v448
        %450 = vst [vmem:[#allocation2 + $0x14] sm:$0x1] %v449
        %v451 = vld [vmem:[#allocation2 + $0x20] sm:$0x1]
        %v452 = vsel %vm444, 0, %v451
        %453 = vst [vmem:[#allocation2 + $0x20] sm:$0x1] %v452
        %v454 = vld [vmem:[#allocation2 + $0x2c] sm:$0x1]
        %v455 = vsel %vm444, 0, %v454
        %456 = vst [vmem:[#allocation2 + $0x2c] sm:$0x1] %v455
        %v457 = vld [vmem:[#allocation2 + $0x38] sm:$0x1]
        %v458 = vsel %vm444, 0, %v457
        %459 = vst [vmem:[#allocation2 + $0x38] sm:$0x1] %v458
        %v460 = vld [vmem:[#allocation2 + $0x44] sm:$0x1]
        %v461 = vsel %vm444, 0, %v460
        %462 = vst [vmem:[#allocation2 + $0x44] sm:$0x1] %v461
        %v463 = vld [vmem:[%s394] sm:$0xf]
        %v464 = vld [vmem:[%s394 + $0x4] sm:$0xf]
        %v465 = vld [vmem:[%s394 + $0x8] sm:$0xf]
        %v466 = vld [vmem:[%s394 + $0xc] sm:$0xf]
        %v467 = vld [vmem:[%s394 + $0x10] sm:$0xf]
        %v468 = vld [vmem:[%s394 + $0x14] sm:$0xf]
        %v469 = vld [vmem:[%s394 + $0x18] sm:$0xf]
        %v470 = vld [vmem:[%s394 + $0x1c] sm:$0xf]
        %vm471 = vsmask.f32 4368
        %vm472 = vmor %vm423, %vm471
        %v474 = vshrl.u32 %v463, 16
        %v476 = vrot.slane %v474, 7
        %v477 = vshll.u32 %v463, 16
        %v479 = vor.u32 %v476, %v477
        %v480 = vrot.slane %v476, 4
        %v482 = vshrl.u32 %v464, 16
        %v484 = vrot.slane %v482, 7
        %v485 = vshll.u32 %v464, 16
        %v487 = vor.u32 %v484, %v485
        %v488 = vsel %vm472, %v480, %v487
        %v489 = vrot.slane %v484, 4
        %v491 = vshrl.u32 %v465, 16
        %v493 = vrot.slane %v491, 7
        %v494 = vshll.u32 %v465, 16
        %v496 = vor.u32 %v493, %v494
        %v497 = vrot.slane %v493, 4
        %v499 = vshrl.u32 %v466, 16
        %v501 = vrot.slane %v499, 7
        %v502 = vshll.u32 %v466, 16
        %v504 = vor.u32 %v501, %v502
        %v505 = vsel %vm472, %v497, %v504
        %v506 = vrot.slane %v501, 4
        %v508 = vshrl.u32 %v467, 16
        %v510 = vrot.slane %v508, 7
        %v511 = vshll.u32 %v467, 16
        %v513 = vor.u32 %v510, %v511
        %v514 = vrot.slane %v510, 4
        %v516 = vshrl.u32 %v468, 16
        %v518 = vrot.slane %v516, 7
        %v519 = vshll.u32 %v468, 16
        %v521 = vor.u32 %v518, %v519
        %v522 = vsel %vm472, %v514, %v521
        %v523 = vrot.slane %v518, 4
        %v525 = vshrl.u32 %v469, 16
        %v527 = vrot.slane %v525, 7
        %v528 = vshll.u32 %v469, 16
        %v530 = vor.u32 %v527, %v528
        %v531 = vrot.slane %v527, 4
        %v533 = vshrl.u32 %v470, 16
        %v535 = vrot.slane %v533, 7
        %v536 = vshll.u32 %v470, 16
        %v538 = vor.u32 %v535, %v536
        %v539 = vsel %vm472, %v531, %v538
        %v540 = vrot.slane %v535, 4
        %s553 = scalar_lea.vmem [#allocation2], 12
        %vm554 = vcmask 60416
        %vm555 = vmand %vm554, %vm443
        %v556 = vld [vmem:[%s553] sm:$0xf]
        %v557 = vsel %vm555, %v479, %v556
        %558 = vst [vmem:[%s553] sm:$0xf] %v557
        %vm559 = vcmask 60416
        %560 = vst.msk [vmem:[%s553 + $0x4] sm:$0xf] %vm559, %v488
        %v561 = vld [vmem:[%s553 + $0x8] sm:$0x1]
        %v562 = vsel %vm424, %v489, %v561
        %563 = vst [vmem:[%s553 + $0x8] sm:$0x1] %v562
        %v564 = vld [vmem:[%s553 + $0xc] sm:$0xf]
        %v565 = vsel %vm555, %v496, %v564
        %566 = vst [vmem:[%s553 + $0xc] sm:$0xf] %v565
        %567 = vst.msk [vmem:[%s553 + $0x10] sm:$0xf] %vm559, %v505
        %v568 = vld [vmem:[%s553 + $0x14] sm:$0x1]
        %v569 = vsel %vm424, %v506, %v568
        %570 = vst [vmem:[%s553 + $0x14] sm:$0x1] %v569
        %v571 = vld [vmem:[%s553 + $0x18] sm:$0xf]
        %v572 = vsel %vm555, %v513, %v571
        %573 = vst [vmem:[%s553 + $0x18] sm:$0xf] %v572
        %574 = vst.msk [vmem:[%s553 + $0x1c] sm:$0xf] %vm559, %v522
        %v575 = vld [vmem:[%s553 + $0x20] sm:$0x1]
        %v576 = vsel %vm424, %v523, %v575
        %577 = vst [vmem:[%s553 + $0x20] sm:$0x1] %v576
        %v578 = vld [vmem:[%s553 + $0x24] sm:$0xf]
        %v579 = vsel %vm555, %v530, %v578
        %580 = vst [vmem:[%s553 + $0x24] sm:$0xf] %v579
        %581 = vst.msk [vmem:[%s553 + $0x28] sm:$0xf] %vm559, %v539
        %v582 = vld [vmem:[%s553 + $0x2c] sm:$0x1]
        %v583 = vsel %vm424, %v540, %v582
        %584 = vst [vmem:[%s553 + $0x2c] sm:$0x1] %v583
        %p585 = scmp.eq.s32.totalorder %s26, 0
        // Predicated region
        $region41: #{tpu_custom_call.1} parent=39 // pred_check
          %p586 = pneg %p585
        $region42: #{tpu_custom_call.1} parent=39 // pred_check_branch
          %588 = sbr.rel (%p586) target = $region44
        $region43: #{tpu_custom_call.1} parent=39 // pred_region
          %v589 = vld [vmem:[#allocation2] sm:$0xf]
          %v590 = vsel %vm555, 0, %v589
          %591 = vst [vmem:[#allocation2] sm:$0xf] %v590
          %592 = vst.msk [vmem:[#allocation2 + $0x4] sm:$0xf] %vm559, 0
          %v593 = vld [vmem:[#allocation2 + $0x8] sm:$0x1]
          %v594 = vsel %vm424, 0, %v593
          %595 = vst [vmem:[#allocation2 + $0x8] sm:$0x1] %v594
        $region44: #{tpu_custom_call.1} parent=39 // pred_fallthru
          _
        %p596 = scmp.gt.s32.totalorder %s26, 0
        // Predicated region
        $region45: #{tpu_custom_call.1} parent=39 // pred_check
          %p597 = pneg %p596
        $region46: #{tpu_custom_call.1} parent=39 // pred_check_branch
          %599 = sbr.rel (%p597) target = $region48
        $region47: #{tpu_custom_call.1} parent=39 // pred_region
          %v600 = vld [vmem:[%s380] sm:$0xf]
          %v601 = vld [vmem:[%s380 + $0x4] sm:$0xf]
          %v603 = vshrl.u32 %v600, 16
          %v605 = vrot.slane %v603, 7
          %v606 = vshll.u32 %v600, 16
          %v608 = vor.u32 %v605, %v606
          %v609 = vrot.slane %v605, 4
          %v611 = vshrl.u32 %v601, 16
          %v613 = vrot.slane %v611, 7
          %v614 = vshll.u32 %v601, 16
          %v616 = vor.u32 %v613, %v614
          %v617 = vsel %vm472, %v609, %v616
          %v618 = vrot.slane %v613, 4
          %v622 = vld [vmem:[#allocation2] sm:$0xf]
          %v623 = vsel %vm555, %v608, %v622
          %624 = vst [vmem:[#allocation2] sm:$0xf] %v623
          %625 = vst.msk [vmem:[#allocation2 + $0x4] sm:$0xf] %vm559, %v617
          %v626 = vld [vmem:[#allocation2 + $0x8] sm:$0x1]
          %v627 = vsel %vm424, %v618, %v626
          %628 = vst [vmem:[#allocation2 + $0x8] sm:$0x1] %v627
        $region48: #{tpu_custom_call.1} parent=39 // pred_fallthru
          _
        %p629 = scmp.eq.s32.totalorder %s26, 3
        // Predicated region
        $region49: #{tpu_custom_call.1} parent=39 // pred_check
          %p630 = pneg %p629
        $region50: #{tpu_custom_call.1} parent=39 // pred_check_branch
          %632 = sbr.rel (%p630) target = $region52
        $region51: #{tpu_custom_call.1} parent=39 // pred_region
          %s633 = scalar_lea.vmem [#allocation2], 60
          %v634 = vld [vmem:[%s633] sm:$0xf]
          %v635 = vsel %vm555, 0, %v634
          %636 = vst [vmem:[%s633] sm:$0xf] %v635
          %637 = vst.msk [vmem:[%s633 + $0x4] sm:$0xf] %vm559, 0
          %v638 = vld [vmem:[%s633 + $0x8] sm:$0x1]
          %v639 = vsel %vm424, 0, %v638
          %640 = vst [vmem:[%s633 + $0x8] sm:$0x1] %v639
        $region52: #{tpu_custom_call.1} parent=39 // pred_fallthru
          _
        %p641 = scmp.lt.s32.totalorder %s26, 3
        // Predicated region
        $region53: #{tpu_custom_call.1} parent=39 // pred_check
          %p642 = pneg %p641
        $region54: #{tpu_custom_call.1} parent=39 // pred_check_branch
          %644 = sbr.rel (%p642) target = $region56
        $region55: #{tpu_custom_call.1} parent=39 // pred_region
          %v645 = vld [vmem:[%s408] sm:$0xf]
          %v646 = vld [vmem:[%s408 + $0x4] sm:$0xf]
          %v648 = vshrl.u32 %v645, 16
          %v650 = vrot.slane %v648, 7
          %v651 = vshll.u32 %v645, 16
          %v653 = vor.u32 %v650, %v651
          %v654 = vrot.slane %v650, 4
          %v656 = vshrl.u32 %v646, 16
          %v658 = vrot.slane %v656, 7
          %v659 = vshll.u32 %v646, 16
          %v661 = vor.u32 %v658, %v659
          %v662 = vsel %vm472, %v654, %v661
          %v663 = vrot.slane %v658, 4
          %s667 = scalar_lea.vmem [#allocation2], 60
          %v668 = vld [vmem:[%s667] sm:$0xf]
          %v669 = vsel %vm555, %v653, %v668
          %670 = vst [vmem:[%s667] sm:$0xf] %v669
          %671 = vst.msk [vmem:[%s667 + $0x4] sm:$0xf] %vm559, %v662
          %v672 = vld [vmem:[%s667 + $0x8] sm:$0x1]
          %v673 = vsel %vm424, %v663, %v672
          %674 = vst [vmem:[%s667 + $0x8] sm:$0x1] %v673
        $region56: #{tpu_custom_call.1} parent=39 // pred_fallthru
          _
        %v675 = vld [vmem:[#allocation2] sm:$0xf]
        %v676 = vld [vmem:[#allocation2 + $0x4] sm:$0xf]
        %v677 = vld [vmem:[#allocation2 + $0xc] sm:$0xf]
        %v678 = vld [vmem:[#allocation2 + $0x10] sm:$0xf]
        %v679 = vld [vmem:[#allocation2 + $0x18] sm:$0xf]
        %v680 = vld [vmem:[#allocation2 + $0x1c] sm:$0xf]
        %v681 = vld [vmem:[#allocation2 + $0x24] sm:$0xf]
        %v682 = vld [vmem:[#allocation2 + $0x28] sm:$0xf]
        %v683 = vld [vmem:[%s416] sm:$0xf]
        %v684 = vld [vmem:[#allocation2 + $0x8] sm:$0x1]
        %v685 = vld [vmem:[#allocation2 + $0x14] sm:$0x1]
        %v686 = vld [vmem:[#allocation2 + $0x20] sm:$0x1]
        %v687 = vld [vmem:[#allocation2 + $0x2c] sm:$0x1]
        %vm688 = vsmask.f32 3328
        %vm689 = vsmask.f32 7440
        %vm690 = vmor %vm688, %vm689
        %v692 = vshrl.u32 %v675, 16
        %v694 = vrot.slane %v692, 4
        %v695 = vshll.u32 %v675, 16
        %v697 = vrot.slane %v695, 5
        %v698 = vor.u32 %v694, %v697
        %v699 = vrot.slane %v698, 4
        %v701 = vshll.u32 %v676, 16
        %v703 = vrot.slane %v701, 5
        %v704 = vsel %vm690, %v699, %v703
        %v705 = vshrl.u32 %v676, 16
        %v707 = vrot.slane %v705, 4
        %v708 = vor.u32 %v707, %v703
        %v709 = vrot.slane %v708, 4
        %v711 = vshll.u32 %v684, 16
        %v713 = vrot.slane %v711, 5
        %v714 = vsel %vm690, %v709, %v713
        %v716 = vshrl.u32 %v677, 16
        %v718 = vrot.slane %v716, 4
        %v719 = vshll.u32 %v677, 16
        %v721 = vrot.slane %v719, 5
        %v722 = vor.u32 %v718, %v721
        %v723 = vrot.slane %v722, 4
        %v725 = vshll.u32 %v678, 16
        %v727 = vrot.slane %v725, 5
        %v728 = vsel %vm690, %v723, %v727
        %v729 = vshrl.u32 %v678, 16
        %v731 = vrot.slane %v729, 4
        %v732 = vor.u32 %v731, %v727
        %v733 = vrot.slane %v732, 4
        %v735 = vshll.u32 %v685, 16
        %v737 = vrot.slane %v735, 5
        %v738 = vsel %vm690, %v733, %v737
        %v740 = vshrl.u32 %v679, 16
        %v742 = vrot.slane %v740, 4
        %v743 = vshll.u32 %v679, 16
        %v745 = vrot.slane %v743, 5
        %v746 = vor.u32 %v742, %v745
        %v747 = vrot.slane %v746, 4
        %v749 = vshll.u32 %v680, 16
        %v751 = vrot.slane %v749, 5
        %v752 = vsel %vm690, %v747, %v751
        %v753 = vshrl.u32 %v680, 16
        %v755 = vrot.slane %v753, 4
        %v756 = vor.u32 %v755, %v751
        %v757 = vrot.slane %v756, 4
        %v759 = vshll.u32 %v686, 16
        %v761 = vrot.slane %v759, 5
        %v762 = vsel %vm690, %v757, %v761
        %v764 = vshrl.u32 %v681, 16
        %v766 = vrot.slane %v764, 4
        %v767 = vshll.u32 %v681, 16
        %v769 = vrot.slane %v767, 5
        %v770 = vor.u32 %v766, %v769
        %v771 = vrot.slane %v770, 4
        %v773 = vshll.u32 %v682, 16
        %v775 = vrot.slane %v773, 5
        %v776 = vsel %vm690, %v771, %v775
        %v777 = vshrl.u32 %v682, 16
        %v779 = vrot.slane %v777, 4
        %v780 = vor.u32 %v779, %v775
        %v781 = vrot.slane %v780, 4
        %v783 = vshll.u32 %v687, 16
        %v785 = vrot.slane %v783, 5
        %v786 = vsel %vm690, %v781, %v785
        %s787 = scalar_lea.vmem %s416, 4
        %v788 = vld [vmem:[%s787] sm:$0xf]
        %v789 = vunpack.c.l.b16 %v704
        %v790 = vunpack.c.l.b16 %v714
        %v791 = vunpack.c.l.b16 %v728
        %v792 = vunpack.c.l.b16 %v738
        %v793 = vunpack.c.l.b16 %v752
        %v794 = vunpack.c.l.b16 %v762
        %v795 = vunpack.c.l.b16 %v776
        %v796 = vunpack.c.l.b16 %v786
        %v797 = vpack.c.b16 %v790, %v789
        %v798 = vpack.c.b16 %v792, %v791
        %v799 = vpack.c.b16 %v794, %v793
        %v800 = vpack.c.b16 %v796, %v795
        %vm801 = vcmask 64512
        %v803 = vsel %vm801, %v797, 0
        %v806 = vsel %vm801, %v798, 0
        %v809 = vsel %vm801, %v799, 0
        %v812 = vsel %vm801, %v800, 0
        %vm814 = vcmask 1043456
        %v816 = vsel %vm814, %v788, 0
        %818 = vmatprep.subr.bf16.mxu0 0
        %819 = vmatpush1.bf16.msra.mxu0 0
        %820 = vmatprep.subr.bf16.mxu0 0
        %821 = vmatpush1.bf16.msra.mxu0 0
        %822 = vmatprep.subr.bf16.mxu0 0
        %823 = vmatpush1.bf16.msra.mxu0 0
        %824 = vmatprep.subr.bf16.mxu0 0
        %825 = vmatpush1.bf16.msra.mxu0 0
        %826 = vmatprep.subr.bf16.mxu0 0
        %827 = vmatpush1.bf16.msra.mxu0 0
        %828 = vmatprep.subr.bf16.mxu0 0
        %829 = vmatpush1.bf16.msra.mxu0 0
        %830 = vmatprep.subr.bf16.mxu0 0
        %831 = vmatpush1.bf16.msra.mxu0 0
        %832 = vmatprep.subr.bf16.mxu0 0
        %833 = vmatpush1.bf16.msra.mxu0 %v816
        %834 = vmatprep.subr.bf16.mxu0 0
        %835 = vmatpush2.bf16.msra.mxu0 0
        %836 = vmatprep.subr.bf16.mxu0 0
        %837 = vmatpush2.bf16.msra.mxu0 0
        %838 = vmatprep.subr.bf16.mxu0 0
        %839 = vmatpush2.bf16.msra.mxu0 0
        %840 = vmatprep.subr.bf16.mxu0 0
        %841 = vmatpush2.bf16.msra.mxu0 0
        %842 = vmatprep.subr.bf16.mxu0 0
        %843 = vmatpush2.bf16.msra.mxu0 0
        %844 = vmatprep.subr.bf16.mxu0 0
        %845 = vmatpush2.bf16.msra.mxu0 0
        %846 = vmatprep.subr.bf16.mxu0 0
        %847 = vmatpush2.bf16.msra.mxu0 0
        %848 = vmatprep.subr.bf16.mxu0 0
        %849 = vmatpush2.bf16.msra.mxu0 0
        %850 = vmatprep.mubr.bf16.mxu0 0
        %851 = vmatmul.mubr.bf16.gmra.mxu0 %v803
        %v852 = vpop.f32.mrf.mxu0
        %v853 = vadd.f32 0.0, %v852
        %v854 = vpop.f32.mrf.mxu0
        %v855 = vpop.f32.mrf.mxu0
        %v856 = vadd.f32 0.0, %v855
        %v857 = vpop.f32.mrf.mxu0
        %858 = vmatprep.mubr.bf16.mxu0 0
        %859 = vmatmul.mubr.bf16.gmra.mxu0 %v806
        %v860 = vpop.f32.mrf.mxu0
        %v861 = vadd.f32 0.0, %v860
        %v862 = vpop.f32.mrf.mxu0
        %v863 = vpop.f32.mrf.mxu0
        %v864 = vadd.f32 0.0, %v863
        %v865 = vpop.f32.mrf.mxu0
        %866 = vmatprep.mubr.bf16.mxu0 0
        %867 = vmatmul.mubr.bf16.gmra.mxu0 %v809
        %v868 = vpop.f32.mrf.mxu0
        %v869 = vadd.f32 0.0, %v868
        %v870 = vpop.f32.mrf.mxu0
        %v871 = vpop.f32.mrf.mxu0
        %v872 = vadd.f32 0.0, %v871
        %v873 = vpop.f32.mrf.mxu0
        %874 = vmatprep.mubr.bf16.mxu0 0
        %875 = vmatmul.mubr.bf16.gmra.mxu0 %v812
        %v876 = vpop.f32.mrf.mxu0
        %v877 = vadd.f32 0.0, %v876
        %v878 = vpop.f32.mrf.mxu0
        %v879 = vpop.f32.mrf.mxu0
        %v880 = vadd.f32 0.0, %v879
        %v881 = vpop.f32.mrf.mxu0
        %882 = vdwg.mxu0
        %v891 = vunpack.c.l.b16 %v675
        %v892 = vunpack.c.l.b16 %v676
        %v893 = vunpack.c.l.b16 %v677
        %v894 = vunpack.c.l.b16 %v678
        %v895 = vunpack.c.l.b16 %v679
        %v896 = vunpack.c.l.b16 %v680
        %v897 = vunpack.c.l.b16 %v681
        %v898 = vunpack.c.l.b16 %v682
        %v899 = vpack.c.b16 %v892, %v891
        %v900 = vpack.c.b16 %v894, %v893
        %v901 = vpack.c.b16 %v896, %v895
        %v902 = vpack.c.b16 %v898, %v897
        %v904 = vsel %vm801, %v899, 0
        %v907 = vsel %vm801, %v900, 0
        %v910 = vsel %vm801, %v901, 0
        %v913 = vsel %vm801, %v902, 0
        %v916 = vsel %vm814, %v683, 0
        %918 = vmatprep.subr.bf16.mxu0 0
        %919 = vmatpush1.bf16.msra.mxu0 0
        %920 = vmatprep.subr.bf16.mxu0 0
        %921 = vmatpush1.bf16.msra.mxu0 0
        %922 = vmatprep.subr.bf16.mxu0 0
        %923 = vmatpush1.bf16.msra.mxu0 0
        %924 = vmatprep.subr.bf16.mxu0 0
        %925 = vmatpush1.bf16.msra.mxu0 0
        %926 = vmatprep.subr.bf16.mxu0 0
        %927 = vmatpush1.bf16.msra.mxu0 0
        %928 = vmatprep.subr.bf16.mxu0 0
        %929 = vmatpush1.bf16.msra.mxu0 0
        %930 = vmatprep.subr.bf16.mxu0 0
        %931 = vmatpush1.bf16.msra.mxu0 0
        %932 = vmatprep.subr.bf16.mxu0 0
        %933 = vmatpush1.bf16.msra.mxu0 %v916
        %934 = vmatprep.subr.bf16.mxu0 0
        %935 = vmatpush2.bf16.msra.mxu0 0
        %936 = vmatprep.subr.bf16.mxu0 0
        %937 = vmatpush2.bf16.msra.mxu0 0
        %938 = vmatprep.subr.bf16.mxu0 0
        %939 = vmatpush2.bf16.msra.mxu0 0
        %940 = vmatprep.subr.bf16.mxu0 0
        %941 = vmatpush2.bf16.msra.mxu0 0
        %942 = vmatprep.subr.bf16.mxu0 0
        %943 = vmatpush2.bf16.msra.mxu0 0
        %944 = vmatprep.subr.bf16.mxu0 0
        %945 = vmatpush2.bf16.msra.mxu0 0
        %946 = vmatprep.subr.bf16.mxu0 0
        %947 = vmatpush2.bf16.msra.mxu0 0
        %948 = vmatprep.subr.bf16.mxu0 0
        %949 = vmatpush2.bf16.msra.mxu0 0
        %950 = vmatprep.mubr.bf16.mxu0 0
        %951 = vmatmul.mubr.bf16.gmra.mxu0 %v904
        %v952 = vpop.f32.mrf.mxu0
        %v953 = vadd.f32 %v853, %v952
        %v954 = vpop.f32.mrf.mxu0
        %v955 = vpop.f32.mrf.mxu0
        %v956 = vadd.f32 %v856, %v955
        %v957 = vpop.f32.mrf.mxu0
        %958 = vmatprep.mubr.bf16.mxu0 0
        %959 = vmatmul.mubr.bf16.gmra.mxu0 %v907
        %v960 = vpop.f32.mrf.mxu0
        %v961 = vadd.f32 %v861, %v960
        %v962 = vpop.f32.mrf.mxu0
        %v963 = vpop.f32.mrf.mxu0
        %v964 = vadd.f32 %v864, %v963
        %v965 = vpop.f32.mrf.mxu0
        %966 = vmatprep.mubr.bf16.mxu0 0
        %967 = vmatmul.mubr.bf16.gmra.mxu0 %v910
        %v968 = vpop.f32.mrf.mxu0
        %v969 = vadd.f32 %v869, %v968
        %v970 = vpop.f32.mrf.mxu0
        %v971 = vpop.f32.mrf.mxu0
        %v972 = vadd.f32 %v872, %v971
        %v973 = vpop.f32.mrf.mxu0
        %974 = vmatprep.mubr.bf16.mxu0 0
        %975 = vmatmul.mubr.bf16.gmra.mxu0 %v913
        %v976 = vpop.f32.mrf.mxu0
        %v977 = vadd.f32 %v877, %v976
        %v978 = vpop.f32.mrf.mxu0
        %v979 = vpop.f32.mrf.mxu0
        %v980 = vadd.f32 %v880, %v979
        %v981 = vpop.f32.mrf.mxu0
        %982 = vdwg.mxu0
        %v983 = vld [vmem:[#allocation2] sm:$0xe]
        %v984 = vld [vmem:[#allocation2 + $0xc] sm:$0xe]
        %v985 = vld [vmem:[#allocation2 + $0x18] sm:$0xe]
        %v986 = vld [vmem:[#allocation2 + $0x24] sm:$0xe]
        %vm995 = vcmask 1042432
        %vm996 = vcmask 1046532
        %vm997 = vmor %vm995, %vm996
        %v998 = vrot.slane %v983, 5
        %v999 = vrot.slane %v998, 4
        %v1000 = vrot.slane %v676, 5
        %v1001 = vsel %vm997, %v999, %v1000
        %v1002 = vrot.slane %v1000, 4
        %v1003 = vrot.slane %v684, 5
        %v1004 = vsel %vm997, %v1002, %v1003
        %v1005 = vrot.slane %v984, 5
        %v1006 = vrot.slane %v1005, 4
        %v1007 = vrot.slane %v678, 5
        %v1008 = vsel %vm997, %v1006, %v1007
        %v1009 = vrot.slane %v1007, 4
        %v1010 = vrot.slane %v685, 5
        %v1011 = vsel %vm997, %v1009, %v1010
        %v1012 = vrot.slane %v985, 5
        %v1013 = vrot.slane %v1012, 4
        %v1014 = vrot.slane %v680, 5
        %v1015 = vsel %vm997, %v1013, %v1014
        %v1016 = vrot.slane %v1014, 4
        %v1017 = vrot.slane %v686, 5
        %v1018 = vsel %vm997, %v1016, %v1017
        %v1019 = vrot.slane %v986, 5
        %v1020 = vrot.slane %v1019, 4
        %v1021 = vrot.slane %v682, 5
        %v1022 = vsel %vm997, %v1020, %v1021
        %v1023 = vrot.slane %v1021, 4
        %v1024 = vrot.slane %v687, 5
        %v1025 = vsel %vm997, %v1023, %v1024
        %s1026 = scalar_lea.vmem %s416, 8
        %v1027 = vld [vmem:[%s1026] sm:$0xf]
        %v1028 = vunpack.c.l.b16 %v1001
        %v1029 = vunpack.c.l.b16 %v1004
        %v1030 = vunpack.c.l.b16 %v1008
        %v1031 = vunpack.c.l.b16 %v1011
        %v1032 = vunpack.c.l.b16 %v1015
        %v1033 = vunpack.c.l.b16 %v1018
        %v1034 = vunpack.c.l.b16 %v1022
        %v1035 = vunpack.c.l.b16 %v1025
        %v1036 = vpack.c.b16 %v1029, %v1028
        %v1037 = vpack.c.b16 %v1031, %v1030
        %v1038 = vpack.c.b16 %v1033, %v1032
        %v1039 = vpack.c.b16 %v1035, %v1034
        %v1041 = vsel %vm801, %v1036, 0
        %v1044 = vsel %vm801, %v1037, 0
        %v1047 = vsel %vm801, %v1038, 0
        %v1050 = vsel %vm801, %v1039, 0
        %v1053 = vsel %vm814, %v1027, 0
        %1055 = vmatprep.subr.bf16.mxu0 0
        %1056 = vmatpush1.bf16.msra.mxu0 0
        %1057 = vmatprep.subr.bf16.mxu0 0
        %1058 = vmatpush1.bf16.msra.mxu0 0
        %1059 = vmatprep.subr.bf16.mxu0 0
        %1060 = vmatpush1.bf16.msra.mxu0 0
        %1061 = vmatprep.subr.bf16.mxu0 0
        %1062 = vmatpush1.bf16.msra.mxu0 0
        %1063 = vmatprep.subr.bf16.mxu0 0
        %1064 = vmatpush1.bf16.msra.mxu0 0
        %1065 = vmatprep.subr.bf16.mxu0 0
        %1066 = vmatpush1.bf16.msra.mxu0 0
        %1067 = vmatprep.subr.bf16.mxu0 0
        %1068 = vmatpush1.bf16.msra.mxu0 0
        %1069 = vmatprep.subr.bf16.mxu0 0
        %1070 = vmatpush1.bf16.msra.mxu0 %v1053
        %1071 = vmatprep.subr.bf16.mxu0 0
        %1072 = vmatpush2.bf16.msra.mxu0 0
        %1073 = vmatprep.subr.bf16.mxu0 0
        %1074 = vmatpush2.bf16.msra.mxu0 0
        %1075 = vmatprep.subr.bf16.mxu0 0
        %1076 = vmatpush2.bf16.msra.mxu0 0
        %1077 = vmatprep.subr.bf16.mxu0 0
        %1078 = vmatpush2.bf16.msra.mxu0 0
        %1079 = vmatprep.subr.bf16.mxu0 0
        %1080 = vmatpush2.bf16.msra.mxu0 0
        %1081 = vmatprep.subr.bf16.mxu0 0
        %1082 = vmatpush2.bf16.msra.mxu0 0
        %1083 = vmatprep.subr.bf16.mxu0 0
        %1084 = vmatpush2.bf16.msra.mxu0 0
        %1085 = vmatprep.subr.bf16.mxu0 0
        %1086 = vmatpush2.bf16.msra.mxu0 0
        %1087 = vmatprep.mubr.bf16.mxu0 0
        %1088 = vmatmul.mubr.bf16.gmra.mxu0 %v1041
        %v1089 = vpop.f32.mrf.mxu0
        %v1090 = vadd.f32 0.0, %v1089
        %v1091 = vpop.f32.mrf.mxu0
        %v1092 = vpop.f32.mrf.mxu0
        %v1093 = vadd.f32 0.0, %v1092
        %v1094 = vpop.f32.mrf.mxu0
        %1095 = vmatprep.mubr.bf16.mxu0 0
        %1096 = vmatmul.mubr.bf16.gmra.mxu0 %v1044
        %v1097 = vpop.f32.mrf.mxu0
        %v1098 = vadd.f32 0.0, %v1097
        %v1099 = vpop.f32.mrf.mxu0
        %v1100 = vpop.f32.mrf.mxu0
        %v1101 = vadd.f32 0.0, %v1100
        %v1102 = vpop.f32.mrf.mxu0
        %1103 = vmatprep.mubr.bf16.mxu0 0
        %1104 = vmatmul.mubr.bf16.gmra.mxu0 %v1047
        %v1105 = vpop.f32.mrf.mxu0
        %v1106 = vadd.f32 0.0, %v1105
        %v1107 = vpop.f32.mrf.mxu0
        %v1108 = vpop.f32.mrf.mxu0
        %v1109 = vadd.f32 0.0, %v1108
        %v1110 = vpop.f32.mrf.mxu0
        %1111 = vmatprep.mubr.bf16.mxu0 0
        %1112 = vmatmul.mubr.bf16.gmra.mxu0 %v1050
        %v1113 = vpop.f32.mrf.mxu0
        %v1114 = vadd.f32 0.0, %v1113
        %v1115 = vpop.f32.mrf.mxu0
        %v1116 = vpop.f32.mrf.mxu0
        %v1117 = vadd.f32 0.0, %v1116
        %v1118 = vpop.f32.mrf.mxu0
        %1119 = vdwg.mxu0
        %v1120 = vadd.f32 %v953, %v1090
        %v1121 = vadd.f32 %v956, %v1093
        %v1122 = vadd.f32 %v961, %v1098
        %v1123 = vadd.f32 %v964, %v1101
        %v1124 = vadd.f32 %v969, %v1106
        %v1125 = vadd.f32 %v972, %v1109
        %v1126 = vadd.f32 %v977, %v1114
        %v1127 = vadd.f32 %v980, %v1117
        %v1128 = vld [vmem:[%s553] sm:$0xf]
        %v1129 = vld [vmem:[%s553 + $0x4] sm:$0xf]
        %v1130 = vld [vmem:[%s553 + $0xc] sm:$0xf]
        %v1131 = vld [vmem:[%s553 + $0x10] sm:$0xf]
        %v1132 = vld [vmem:[%s553 + $0x18] sm:$0xf]
        %v1133 = vld [vmem:[%s553 + $0x1c] sm:$0xf]
        %v1134 = vld [vmem:[%s553 + $0x24] sm:$0xf]
        %v1135 = vld [vmem:[%s553 + $0x28] sm:$0xf]
        %s1136 = scalar_lea.vmem %s416, 12
        %v1137 = vld [vmem:[%s1136] sm:$0xf]
        %v1146 = vunpack.c.l.b16 %v1128
        %v1147 = vunpack.c.l.b16 %v1129
        %v1148 = vunpack.c.l.b16 %v1130
        %v1149 = vunpack.c.l.b16 %v1131
        %v1150 = vunpack.c.l.b16 %v1132
        %v1151 = vunpack.c.l.b16 %v1133
        %v1152 = vunpack.c.l.b16 %v1134
        %v1153 = vunpack.c.l.b16 %v1135
        %v1154 = vpack.c.b16 %v1147, %v1146
        %v1155 = vpack.c.b16 %v1149, %v1148
        %v1156 = vpack.c.b16 %v1151, %v1150
        %v1157 = vpack.c.b16 %v1153, %v1152
        %v1159 = vsel %vm801, %v1154, 0
        %v1162 = vsel %vm801, %v1155, 0
        %v1165 = vsel %vm801, %v1156, 0
        %v1168 = vsel %vm801, %v1157, 0
        %v1171 = vsel %vm814, %v1137, 0
        %1173 = vmatprep.subr.bf16.mxu0 0
        %1174 = vmatpush1.bf16.msra.mxu0 0
        %1175 = vmatprep.subr.bf16.mxu0 0
        %1176 = vmatpush1.bf16.msra.mxu0 0
        %1177 = vmatprep.subr.bf16.mxu0 0
        %1178 = vmatpush1.bf16.msra.mxu0 0
        %1179 = vmatprep.subr.bf16.mxu0 0
        %1180 = vmatpush1.bf16.msra.mxu0 0
        %1181 = vmatprep.subr.bf16.mxu0 0
        %1182 = vmatpush1.bf16.msra.mxu0 0
        %1183 = vmatprep.subr.bf16.mxu0 0
        %1184 = vmatpush1.bf16.msra.mxu0 0
        %1185 = vmatprep.subr.bf16.mxu0 0
        %1186 = vmatpush1.bf16.msra.mxu0 0
        %1187 = vmatprep.subr.bf16.mxu0 0
        %1188 = vmatpush1.bf16.msra.mxu0 %v1171
        %1189 = vmatprep.subr.bf16.mxu0 0
        %1190 = vmatpush2.bf16.msra.mxu0 0
        %1191 = vmatprep.subr.bf16.mxu0 0
        %1192 = vmatpush2.bf16.msra.mxu0 0
        %1193 = vmatprep.subr.bf16.mxu0 0
        %1194 = vmatpush2.bf16.msra.mxu0 0
        %1195 = vmatprep.subr.bf16.mxu0 0
        %1196 = vmatpush2.bf16.msra.mxu0 0
        %1197 = vmatprep.subr.bf16.mxu0 0
        %1198 = vmatpush2.bf16.msra.mxu0 0
        %1199 = vmatprep.subr.bf16.mxu0 0
        %1200 = vmatpush2.bf16.msra.mxu0 0
        %1201 = vmatprep.subr.bf16.mxu0 0
        %1202 = vmatpush2.bf16.msra.mxu0 0
        %1203 = vmatprep.subr.bf16.mxu0 0
        %1204 = vmatpush2.bf16.msra.mxu0 0
        %1205 = vmatprep.mubr.bf16.mxu0 0
        %1206 = vmatmul.mubr.bf16.gmra.mxu0 %v1159
        %v1207 = vpop.f32.mrf.mxu0
        %v1208 = vadd.f32 0.0, %v1207
        %v1209 = vpop.f32.mrf.mxu0
        %v1210 = vpop.f32.mrf.mxu0
        %v1211 = vadd.f32 0.0, %v1210
        %v1212 = vpop.f32.mrf.mxu0
        %1213 = vmatprep.mubr.bf16.mxu0 0
        %1214 = vmatmul.mubr.bf16.gmra.mxu0 %v1162
        %v1215 = vpop.f32.mrf.mxu0
        %v1216 = vadd.f32 0.0, %v1215
        %v1217 = vpop.f32.mrf.mxu0
        %v1218 = vpop.f32.mrf.mxu0
        %v1219 = vadd.f32 0.0, %v1218
        %v1220 = vpop.f32.mrf.mxu0
        %1221 = vmatprep.mubr.bf16.mxu0 0
        %1222 = vmatmul.mubr.bf16.gmra.mxu0 %v1165
        %v1223 = vpop.f32.mrf.mxu0
        %v1224 = vadd.f32 0.0, %v1223
        %v1225 = vpop.f32.mrf.mxu0
        %v1226 = vpop.f32.mrf.mxu0
        %v1227 = vadd.f32 0.0, %v1226
        %v1228 = vpop.f32.mrf.mxu0
        %1229 = vmatprep.mubr.bf16.mxu0 0
        %1230 = vmatmul.mubr.bf16.gmra.mxu0 %v1168
        %v1231 = vpop.f32.mrf.mxu0
        %v1232 = vadd.f32 0.0, %v1231
        %v1233 = vpop.f32.mrf.mxu0
        %v1234 = vpop.f32.mrf.mxu0
        %v1235 = vadd.f32 0.0, %v1234
        %v1236 = vpop.f32.mrf.mxu0
        %1237 = vdwg.mxu0
        %v1238 = vadd.f32 %v1120, %v1208
        %v1239 = vadd.f32 %v1121, %v1211
        %v1240 = vadd.f32 %v1122, %v1216
        %v1241 = vadd.f32 %v1123, %v1219
        %v1242 = vadd.f32 %v1124, %v1224
        %v1243 = vadd.f32 %v1125, %v1227
        %v1244 = vadd.f32 %v1126, %v1232
        %v1245 = vadd.f32 %v1127, %v1235
        %v1246 = vld [vmem:[%s553] sm:$0xf]
        %v1247 = vld [vmem:[%s553 + $0x4] sm:$0xf]
        %v1248 = vld [vmem:[%s553 + $0x8] sm:$0x1]
        %v1249 = vld [vmem:[%s553 + $0xc] sm:$0xf]
        %v1250 = vld [vmem:[%s553 + $0x10] sm:$0xf]
        %v1251 = vld [vmem:[%s553 + $0x14] sm:$0x1]
        %v1252 = vld [vmem:[%s553 + $0x18] sm:$0xf]
        %v1253 = vld [vmem:[%s553 + $0x1c] sm:$0xf]
        %v1254 = vld [vmem:[%s553 + $0x20] sm:$0x1]
        %v1255 = vld [vmem:[%s553 + $0x24] sm:$0xf]
        %v1256 = vld [vmem:[%s553 + $0x28] sm:$0xf]
        %v1257 = vld [vmem:[%s553 + $0x2c] sm:$0x1]
        %v1259 = vshrl.u32 %v1246, 16
        %v1261 = vrot.slane %v1259, 4
        %v1262 = vshll.u32 %v1246, 16
        %v1264 = vrot.slane %v1262, 5
        %v1265 = vor.u32 %v1261, %v1264
        %v1266 = vrot.slane %v1265, 4
        %v1268 = vshll.u32 %v1247, 16
        %v1270 = vrot.slane %v1268, 5
        %v1271 = vsel %vm690, %v1266, %v1270
        %v1272 = vshrl.u32 %v1247, 16
        %v1274 = vrot.slane %v1272, 4
        %v1275 = vor.u32 %v1274, %v1270
        %v1276 = vrot.slane %v1275, 4
        %v1278 = vshll.u32 %v1248, 16
        %v1280 = vrot.slane %v1278, 5
        %v1281 = vsel %vm690, %v1276, %v1280
        %v1283 = vshrl.u32 %v1249, 16
        %v1285 = vrot.slane %v1283, 4
        %v1286 = vshll.u32 %v1249, 16
        %v1288 = vrot.slane %v1286, 5
        %v1289 = vor.u32 %v1285, %v1288
        %v1290 = vrot.slane %v1289, 4
        %v1292 = vshll.u32 %v1250, 16
        %v1294 = vrot.slane %v1292, 5
        %v1295 = vsel %vm690, %v1290, %v1294
        %v1296 = vshrl.u32 %v1250, 16
        %v1298 = vrot.slane %v1296, 4
        %v1299 = vor.u32 %v1298, %v1294
        %v1300 = vrot.slane %v1299, 4
        %v1302 = vshll.u32 %v1251, 16
        %v1304 = vrot.slane %v1302, 5
        %v1305 = vsel %vm690, %v1300, %v1304
        %v1307 = vshrl.u32 %v1252, 16
        %v1309 = vrot.slane %v1307, 4
        %v1310 = vshll.u32 %v1252, 16
        %v1312 = vrot.slane %v1310, 5
        %v1313 = vor.u32 %v1309, %v1312
        %v1314 = vrot.slane %v1313, 4
        %v1316 = vshll.u32 %v1253, 16
        %v1318 = vrot.slane %v1316, 5
        %v1319 = vsel %vm690, %v1314, %v1318
        %v1320 = vshrl.u32 %v1253, 16
        %v1322 = vrot.slane %v1320, 4
        %v1323 = vor.u32 %v1322, %v1318
        %v1324 = vrot.slane %v1323, 4
        %v1326 = vshll.u32 %v1254, 16
        %v1328 = vrot.slane %v1326, 5
        %v1329 = vsel %vm690, %v1324, %v1328
        %v1331 = vshrl.u32 %v1255, 16
        %v1333 = vrot.slane %v1331, 4
        %v1334 = vshll.u32 %v1255, 16
        %v1336 = vrot.slane %v1334, 5
        %v1337 = vor.u32 %v1333, %v1336
        %v1338 = vrot.slane %v1337, 4
        %v1340 = vshll.u32 %v1256, 16
        %v1342 = vrot.slane %v1340, 5
        %v1343 = vsel %vm690, %v1338, %v1342
        %v1344 = vshrl.u32 %v1256, 16
        %v1346 = vrot.slane %v1344, 4
        %v1347 = vor.u32 %v1346, %v1342
        %v1348 = vrot.slane %v1347, 4
        %v1350 = vshll.u32 %v1257, 16
        %v1352 = vrot.slane %v1350, 5
        %v1353 = vsel %vm690, %v1348, %v1352
        %s1354 = scalar_lea.vmem %s416, 16
        %v1355 = vld [vmem:[%s1354] sm:$0xf]
        %v1356 = vunpack.c.l.b16 %v1271
        %v1357 = vunpack.c.l.b16 %v1281
        %v1358 = vunpack.c.l.b16 %v1295
        %v1359 = vunpack.c.l.b16 %v1305
        %v1360 = vunpack.c.l.b16 %v1319
        %v1361 = vunpack.c.l.b16 %v1329
        %v1362 = vunpack.c.l.b16 %v1343
        %v1363 = vunpack.c.l.b16 %v1353
        %v1364 = vpack.c.b16 %v1357, %v1356
        %v1365 = vpack.c.b16 %v1359, %v1358
        %v1366 = vpack.c.b16 %v1361, %v1360
        %v1367 = vpack.c.b16 %v1363, %v1362
        %v1369 = vsel %vm801, %v1364, 0
        %v1372 = vsel %vm801, %v1365, 0
        %v1375 = vsel %vm801, %v1366, 0
        %v1378 = vsel %vm801, %v1367, 0
        %v1381 = vsel %vm814, %v1355, 0
        %1383 = vmatprep.subr.bf16.mxu0 0
        %1384 = vmatpush1.bf16.msra.mxu0 0
        %1385 = vmatprep.subr.bf16.mxu0 0
        %1386 = vmatpush1.bf16.msra.mxu0 0
        %1387 = vmatprep.subr.bf16.mxu0 0
        %1388 = vmatpush1.bf16.msra.mxu0 0
        %1389 = vmatprep.subr.bf16.mxu0 0
        %1390 = vmatpush1.bf16.msra.mxu0 0
        %1391 = vmatprep.subr.bf16.mxu0 0
        %1392 = vmatpush1.bf16.msra.mxu0 0
        %1393 = vmatprep.subr.bf16.mxu0 0
        %1394 = vmatpush1.bf16.msra.mxu0 0
        %1395 = vmatprep.subr.bf16.mxu0 0
        %1396 = vmatpush1.bf16.msra.mxu0 0
        %1397 = vmatprep.subr.bf16.mxu0 0
        %1398 = vmatpush1.bf16.msra.mxu0 %v1381
        %1399 = vmatprep.subr.bf16.mxu0 0
        %1400 = vmatpush2.bf16.msra.mxu0 0
        %1401 = vmatprep.subr.bf16.mxu0 0
        %1402 = vmatpush2.bf16.msra.mxu0 0
        %1403 = vmatprep.subr.bf16.mxu0 0
        %1404 = vmatpush2.bf16.msra.mxu0 0
        %1405 = vmatprep.subr.bf16.mxu0 0
        %1406 = vmatpush2.bf16.msra.mxu0 0
        %1407 = vmatprep.subr.bf16.mxu0 0
        %1408 = vmatpush2.bf16.msra.mxu0 0
        %1409 = vmatprep.subr.bf16.mxu0 0
        %1410 = vmatpush2.bf16.msra.mxu0 0
        %1411 = vmatprep.subr.bf16.mxu0 0
        %1412 = vmatpush2.bf16.msra.mxu0 0
        %1413 = vmatprep.subr.bf16.mxu0 0
        %1414 = vmatpush2.bf16.msra.mxu0 0
        %1415 = vmatprep.mubr.bf16.mxu0 0
        %1416 = vmatmul.mubr.bf16.gmra.mxu0 %v1369
        %v1417 = vpop.f32.mrf.mxu0
        %v1418 = vadd.f32 0.0, %v1417
        %v1419 = vpop.f32.mrf.mxu0
        %v1420 = vpop.f32.mrf.mxu0
        %v1421 = vadd.f32 0.0, %v1420
        %v1422 = vpop.f32.mrf.mxu0
        %1423 = vmatprep.mubr.bf16.mxu0 0
        %1424 = vmatmul.mubr.bf16.gmra.mxu0 %v1372
        %v1425 = vpop.f32.mrf.mxu0
        %v1426 = vadd.f32 0.0, %v1425
        %v1427 = vpop.f32.mrf.mxu0
        %v1428 = vpop.f32.mrf.mxu0
        %v1429 = vadd.f32 0.0, %v1428
        %v1430 = vpop.f32.mrf.mxu0
        %1431 = vmatprep.mubr.bf16.mxu0 0
        %1432 = vmatmul.mubr.bf16.gmra.mxu0 %v1375
        %v1433 = vpop.f32.mrf.mxu0
        %v1434 = vadd.f32 0.0, %v1433
        %v1435 = vpop.f32.mrf.mxu0
        %v1436 = vpop.f32.mrf.mxu0
        %v1437 = vadd.f32 0.0, %v1436
        %v1438 = vpop.f32.mrf.mxu0
        %1439 = vmatprep.mubr.bf16.mxu0 0
        %1440 = vmatmul.mubr.bf16.gmra.mxu0 %v1378
        %v1441 = vpop.f32.mrf.mxu0
        %v1442 = vadd.f32 0.0, %v1441
        %v1443 = vpop.f32.mrf.mxu0
        %v1444 = vpop.f32.mrf.mxu0
        %v1445 = vadd.f32 0.0, %v1444
        %v1446 = vpop.f32.mrf.mxu0
        %1447 = vdwg.mxu0
        %v1448 = vadd.f32 %v1238, %v1418
        %v1449 = vadd.f32 %v1239, %v1421
        %v1450 = vadd.f32 %v1240, %v1426
        %v1451 = vadd.f32 %v1241, %v1429
        %v1452 = vadd.f32 %v1242, %v1434
        %v1453 = vadd.f32 %v1243, %v1437
        %v1454 = vadd.f32 %v1244, %v1442
        %v1455 = vadd.f32 %v1245, %v1445
        %v1456 = vld [vmem:[%s553] sm:$0xe]
        %v1457 = vld [vmem:[%s553 + $0xc] sm:$0xe]
        %v1458 = vld [vmem:[%s553 + $0x18] sm:$0xe]
        %v1459 = vld [vmem:[%s553 + $0x24] sm:$0xe]
        %v1472 = vrot.slane %v1456, 5
        %v1473 = vrot.slane %v1472, 4
        %v1474 = vrot.slane %v1247, 5
        %v1475 = vsel %vm997, %v1473, %v1474
        %v1476 = vrot.slane %v1474, 4
        %v1477 = vrot.slane %v1248, 5
        %v1478 = vsel %vm997, %v1476, %v1477
        %v1479 = vrot.slane %v1457, 5
        %v1480 = vrot.slane %v1479, 4
        %v1481 = vrot.slane %v1250, 5
        %v1482 = vsel %vm997, %v1480, %v1481
        %v1483 = vrot.slane %v1481, 4
        %v1484 = vrot.slane %v1251, 5
        %v1485 = vsel %vm997, %v1483, %v1484
        %v1486 = vrot.slane %v1458, 5
        %v1487 = vrot.slane %v1486, 4
        %v1488 = vrot.slane %v1253, 5
        %v1489 = vsel %vm997, %v1487, %v1488
        %v1490 = vrot.slane %v1488, 4
        %v1491 = vrot.slane %v1254, 5
        %v1492 = vsel %vm997, %v1490, %v1491
        %v1493 = vrot.slane %v1459, 5
        %v1494 = vrot.slane %v1493, 4
        %v1495 = vrot.slane %v1256, 5
        %v1496 = vsel %vm997, %v1494, %v1495
        %v1497 = vrot.slane %v1495, 4
        %v1498 = vrot.slane %v1257, 5
        %v1499 = vsel %vm997, %v1497, %v1498
        %s1500 = scalar_lea.vmem %s416, 20
        %v1501 = vld [vmem:[%s1500] sm:$0xf]
        %v1502 = vunpack.c.l.b16 %v1475
        %v1503 = vunpack.c.l.b16 %v1478
        %v1504 = vunpack.c.l.b16 %v1482
        %v1505 = vunpack.c.l.b16 %v1485
        %v1506 = vunpack.c.l.b16 %v1489
        %v1507 = vunpack.c.l.b16 %v1492
        %v1508 = vunpack.c.l.b16 %v1496
        %v1509 = vunpack.c.l.b16 %v1499
        %v1510 = vpack.c.b16 %v1503, %v1502
        %v1511 = vpack.c.b16 %v1505, %v1504
        %v1512 = vpack.c.b16 %v1507, %v1506
        %v1513 = vpack.c.b16 %v1509, %v1508
        %v1515 = vsel %vm801, %v1510, 0
        %v1518 = vsel %vm801, %v1511, 0
        %v1521 = vsel %vm801, %v1512, 0
        %v1524 = vsel %vm801, %v1513, 0
        %v1527 = vsel %vm814, %v1501, 0
        %1529 = vmatprep.subr.bf16.mxu0 0
        %1530 = vmatpush1.bf16.msra.mxu0 0
        %1531 = vmatprep.subr.bf16.mxu0 0
        %1532 = vmatpush1.bf16.msra.mxu0 0
        %1533 = vmatprep.subr.bf16.mxu0 0
        %1534 = vmatpush1.bf16.msra.mxu0 0
        %1535 = vmatprep.subr.bf16.mxu0 0
        %1536 = vmatpush1.bf16.msra.mxu0 0
        %1537 = vmatprep.subr.bf16.mxu0 0
        %1538 = vmatpush1.bf16.msra.mxu0 0
        %1539 = vmatprep.subr.bf16.mxu0 0
        %1540 = vmatpush1.bf16.msra.mxu0 0
        %1541 = vmatprep.subr.bf16.mxu0 0
        %1542 = vmatpush1.bf16.msra.mxu0 0
        %1543 = vmatprep.subr.bf16.mxu0 0
        %1544 = vmatpush1.bf16.msra.mxu0 %v1527
        %1545 = vmatprep.subr.bf16.mxu0 0
        %1546 = vmatpush2.bf16.msra.mxu0 0
        %1547 = vmatprep.subr.bf16.mxu0 0
        %1548 = vmatpush2.bf16.msra.mxu0 0
        %1549 = vmatprep.subr.bf16.mxu0 0
        %1550 = vmatpush2.bf16.msra.mxu0 0
        %1551 = vmatprep.subr.bf16.mxu0 0
        %1552 = vmatpush2.bf16.msra.mxu0 0
        %1553 = vmatprep.subr.bf16.mxu0 0
        %1554 = vmatpush2.bf16.msra.mxu0 0
        %1555 = vmatprep.subr.bf16.mxu0 0
        %1556 = vmatpush2.bf16.msra.mxu0 0
        %1557 = vmatprep.subr.bf16.mxu0 0
        %1558 = vmatpush2.bf16.msra.mxu0 0
        %1559 = vmatprep.subr.bf16.mxu0 0
        %1560 = vmatpush2.bf16.msra.mxu0 0
        %1561 = vmatprep.mubr.bf16.mxu0 0
        %1562 = vmatmul.mubr.bf16.gmra.mxu0 %v1515
        %v1563 = vpop.f32.mrf.mxu0
        %v1564 = vadd.f32 0.0, %v1563
        %v1565 = vpop.f32.mrf.mxu0
        %v1566 = vpop.f32.mrf.mxu0
        %v1567 = vadd.f32 0.0, %v1566
        %v1568 = vpop.f32.mrf.mxu0
        %1569 = vmatprep.mubr.bf16.mxu0 0
        %1570 = vmatmul.mubr.bf16.gmra.mxu0 %v1518
        %v1571 = vpop.f32.mrf.mxu0
        %v1572 = vadd.f32 0.0, %v1571
        %v1573 = vpop.f32.mrf.mxu0
        %v1574 = vpop.f32.mrf.mxu0
        %v1575 = vadd.f32 0.0, %v1574
        %v1576 = vpop.f32.mrf.mxu0
        %1577 = vmatprep.mubr.bf16.mxu0 0
        %1578 = vmatmul.mubr.bf16.gmra.mxu0 %v1521
        %v1579 = vpop.f32.mrf.mxu0
        %v1580 = vadd.f32 0.0, %v1579
        %v1581 = vpop.f32.mrf.mxu0
        %v1582 = vpop.f32.mrf.mxu0
        %v1583 = vadd.f32 0.0, %v1582
        %v1584 = vpop.f32.mrf.mxu0
        %1585 = vmatprep.mubr.bf16.mxu0 0
        %1586 = vmatmul.mubr.bf16.gmra.mxu0 %v1524
        %v1587 = vpop.f32.mrf.mxu0
        %v1588 = vadd.f32 0.0, %v1587
        %v1589 = vpop.f32.mrf.mxu0
        %v1590 = vpop.f32.mrf.mxu0
        %v1591 = vadd.f32 0.0, %v1590
        %v1592 = vpop.f32.mrf.mxu0
        %1593 = vdwg.mxu0
        %v1594 = vadd.f32 %v1448, %v1564
        %v1595 = vadd.f32 %v1449, %v1567
        %v1596 = vadd.f32 %v1450, %v1572
        %v1597 = vadd.f32 %v1451, %v1575
        %v1598 = vadd.f32 %v1452, %v1580
        %v1599 = vadd.f32 %v1453, %v1583
        %v1600 = vadd.f32 %v1454, %v1588
        %v1601 = vadd.f32 %v1455, %v1591
        %s1602 = scalar_lea.vmem [#allocation2], 24
        %v1603 = vld [vmem:[%s1602] sm:$0xf]
        %v1604 = vld [vmem:[%s1602 + $0x4] sm:$0xf]
        %v1605 = vld [vmem:[%s1602 + $0xc] sm:$0xf]
        %v1606 = vld [vmem:[%s1602 + $0x10] sm:$0xf]
        %v1607 = vld [vmem:[%s1602 + $0x18] sm:$0xf]
        %v1608 = vld [vmem:[%s1602 + $0x1c] sm:$0xf]
        %v1609 = vld [vmem:[%s1602 + $0x24] sm:$0xf]
        %v1610 = vld [vmem:[%s1602 + $0x28] sm:$0xf]
        %s1611 = scalar_lea.vmem %s416, 24
        %v1612 = vld [vmem:[%s1611] sm:$0xf]
        %v1621 = vunpack.c.l.b16 %v1603
        %v1622 = vunpack.c.l.b16 %v1604
        %v1623 = vunpack.c.l.b16 %v1605
        %v1624 = vunpack.c.l.b16 %v1606
        %v1625 = vunpack.c.l.b16 %v1607
        %v1626 = vunpack.c.l.b16 %v1608
        %v1627 = vunpack.c.l.b16 %v1609
        %v1628 = vunpack.c.l.b16 %v1610
        %v1629 = vpack.c.b16 %v1622, %v1621
        %v1630 = vpack.c.b16 %v1624, %v1623
        %v1631 = vpack.c.b16 %v1626, %v1625
        %v1632 = vpack.c.b16 %v1628, %v1627
        %v1634 = vsel %vm801, %v1629, 0
        %v1637 = vsel %vm801, %v1630, 0
        %v1640 = vsel %vm801, %v1631, 0
        %v1643 = vsel %vm801, %v1632, 0
        %v1646 = vsel %vm814, %v1612, 0
        %1648 = vmatprep.subr.bf16.mxu0 0
        %1649 = vmatpush1.bf16.msra.mxu0 0
        %1650 = vmatprep.subr.bf16.mxu0 0
        %1651 = vmatpush1.bf16.msra.mxu0 0
        %1652 = vmatprep.subr.bf16.mxu0 0
        %1653 = vmatpush1.bf16.msra.mxu0 0
        %1654 = vmatprep.subr.bf16.mxu0 0
        %1655 = vmatpush1.bf16.msra.mxu0 0
        %1656 = vmatprep.subr.bf16.mxu0 0
        %1657 = vmatpush1.bf16.msra.mxu0 0
        %1658 = vmatprep.subr.bf16.mxu0 0
        %1659 = vmatpush1.bf16.msra.mxu0 0
        %1660 = vmatprep.subr.bf16.mxu0 0
        %1661 = vmatpush1.bf16.msra.mxu0 0
        %1662 = vmatprep.subr.bf16.mxu0 0
        %1663 = vmatpush1.bf16.msra.mxu0 %v1646
        %1664 = vmatprep.subr.bf16.mxu0 0
        %1665 = vmatpush2.bf16.msra.mxu0 0
        %1666 = vmatprep.subr.bf16.mxu0 0
        %1667 = vmatpush2.bf16.msra.mxu0 0
        %1668 = vmatprep.subr.bf16.mxu0 0
        %1669 = vmatpush2.bf16.msra.mxu0 0
        %1670 = vmatprep.subr.bf16.mxu0 0
        %1671 = vmatpush2.bf16.msra.mxu0 0
        %1672 = vmatprep.subr.bf16.mxu0 0
        %1673 = vmatpush2.bf16.msra.mxu0 0
        %1674 = vmatprep.subr.bf16.mxu0 0
        %1675 = vmatpush2.bf16.msra.mxu0 0
        %1676 = vmatprep.subr.bf16.mxu0 0
        %1677 = vmatpush2.bf16.msra.mxu0 0
        %1678 = vmatprep.subr.bf16.mxu0 0
        %1679 = vmatpush2.bf16.msra.mxu0 0
        %1680 = vmatprep.mubr.bf16.mxu0 0
        %1681 = vmatmul.mubr.bf16.gmra.mxu0 %v1634
        %v1682 = vpop.f32.mrf.mxu0
        %v1683 = vadd.f32 0.0, %v1682
        %v1684 = vpop.f32.mrf.mxu0
        %v1685 = vpop.f32.mrf.mxu0
        %v1686 = vadd.f32 0.0, %v1685
        %v1687 = vpop.f32.mrf.mxu0
        %1688 = vmatprep.mubr.bf16.mxu0 0
        %1689 = vmatmul.mubr.bf16.gmra.mxu0 %v1637
        %v1690 = vpop.f32.mrf.mxu0
        %v1691 = vadd.f32 0.0, %v1690
        %v1692 = vpop.f32.mrf.mxu0
        %v1693 = vpop.f32.mrf.mxu0
        %v1694 = vadd.f32 0.0, %v1693
        %v1695 = vpop.f32.mrf.mxu0
        %1696 = vmatprep.mubr.bf16.mxu0 0
        %1697 = vmatmul.mubr.bf16.gmra.mxu0 %v1640
        %v1698 = vpop.f32.mrf.mxu0
        %v1699 = vadd.f32 0.0, %v1698
        %v1700 = vpop.f32.mrf.mxu0
        %v1701 = vpop.f32.mrf.mxu0
        %v1702 = vadd.f32 0.0, %v1701
        %v1703 = vpop.f32.mrf.mxu0
        %1704 = vmatprep.mubr.bf16.mxu0 0
        %1705 = vmatmul.mubr.bf16.gmra.mxu0 %v1643
        %v1706 = vpop.f32.mrf.mxu0
        %v1707 = vadd.f32 0.0, %v1706
        %v1708 = vpop.f32.mrf.mxu0
        %v1709 = vpop.f32.mrf.mxu0
        %v1710 = vadd.f32 0.0, %v1709
        %v1711 = vpop.f32.mrf.mxu0
        %1712 = vdwg.mxu0
        %v1713 = vadd.f32 %v1594, %v1683
        %v1714 = vadd.f32 %v1595, %v1686
        %v1715 = vadd.f32 %v1596, %v1691
        %v1716 = vadd.f32 %v1597, %v1694
        %v1717 = vadd.f32 %v1598, %v1699
        %v1718 = vadd.f32 %v1599, %v1702
        %v1719 = vadd.f32 %v1600, %v1707
        %v1720 = vadd.f32 %v1601, %v1710
        %v1721 = vld [vmem:[%s1602] sm:$0xf]
        %v1722 = vld [vmem:[%s1602 + $0x4] sm:$0xf]
        %v1723 = vld [vmem:[%s1602 + $0x8] sm:$0x1]
        %v1724 = vld [vmem:[%s1602 + $0xc] sm:$0xf]
        %v1725 = vld [vmem:[%s1602 + $0x10] sm:$0xf]
        %v1726 = vld [vmem:[%s1602 + $0x14] sm:$0x1]
        %v1727 = vld [vmem:[%s1602 + $0x18] sm:$0xf]
        %v1728 = vld [vmem:[%s1602 + $0x1c] sm:$0xf]
        %v1729 = vld [vmem:[%s1602 + $0x20] sm:$0x1]
        %v1730 = vld [vmem:[%s1602 + $0x24] sm:$0xf]
        %v1731 = vld [vmem:[%s1602 + $0x28] sm:$0xf]
        %v1732 = vld [vmem:[%s1602 + $0x2c] sm:$0x1]
        %v1734 = vshrl.u32 %v1721, 16
        %v1736 = vrot.slane %v1734, 4
        %v1737 = vshll.u32 %v1721, 16
        %v1739 = vrot.slane %v1737, 5
        %v1740 = vor.u32 %v1736, %v1739
        %v1741 = vrot.slane %v1740, 4
        %v1743 = vshll.u32 %v1722, 16
        %v1745 = vrot.slane %v1743, 5
        %v1746 = vsel %vm690, %v1741, %v1745
        %v1747 = vshrl.u32 %v1722, 16
        %v1749 = vrot.slane %v1747, 4
        %v1750 = vor.u32 %v1749, %v1745
        %v1751 = vrot.slane %v1750, 4
        %v1753 = vshll.u32 %v1723, 16
        %v1755 = vrot.slane %v1753, 5
        %v1756 = vsel %vm690, %v1751, %v1755
        %v1758 = vshrl.u32 %v1724, 16
        %v1760 = vrot.slane %v1758, 4
        %v1761 = vshll.u32 %v1724, 16
        %v1763 = vrot.slane %v1761, 5
        %v1764 = vor.u32 %v1760, %v1763
        %v1765 = vrot.slane %v1764, 4
        %v1767 = vshll.u32 %v1725, 16
        %v1769 = vrot.slane %v1767, 5
        %v1770 = vsel %vm690, %v1765, %v1769
        %v1771 = vshrl.u32 %v1725, 16
        %v1773 = vrot.slane %v1771, 4
        %v1774 = vor.u32 %v1773, %v1769
        %v1775 = vrot.slane %v1774, 4
        %v1777 = vshll.u32 %v1726, 16
        %v1779 = vrot.slane %v1777, 5
        %v1780 = vsel %vm690, %v1775, %v1779
        %v1782 = vshrl.u32 %v1727, 16
        %v1784 = vrot.slane %v1782, 4
        %v1785 = vshll.u32 %v1727, 16
        %v1787 = vrot.slane %v1785, 5
        %v1788 = vor.u32 %v1784, %v1787
        %v1789 = vrot.slane %v1788, 4
        %v1791 = vshll.u32 %v1728, 16
        %v1793 = vrot.slane %v1791, 5
        %v1794 = vsel %vm690, %v1789, %v1793
        %v1795 = vshrl.u32 %v1728, 16
        %v1797 = vrot.slane %v1795, 4
        %v1798 = vor.u32 %v1797, %v1793
        %v1799 = vrot.slane %v1798, 4
        %v1801 = vshll.u32 %v1729, 16
        %v1803 = vrot.slane %v1801, 5
        %v1804 = vsel %vm690, %v1799, %v1803
        %v1806 = vshrl.u32 %v1730, 16
        %v1808 = vrot.slane %v1806, 4
        %v1809 = vshll.u32 %v1730, 16
        %v1811 = vrot.slane %v1809, 5
        %v1812 = vor.u32 %v1808, %v1811
        %v1813 = vrot.slane %v1812, 4
        %v1815 = vshll.u32 %v1731, 16
        %v1817 = vrot.slane %v1815, 5
        %v1818 = vsel %vm690, %v1813, %v1817
        %v1819 = vshrl.u32 %v1731, 16
        %v1821 = vrot.slane %v1819, 4
        %v1822 = vor.u32 %v1821, %v1817
        %v1823 = vrot.slane %v1822, 4
        %v1825 = vshll.u32 %v1732, 16
        %v1827 = vrot.slane %v1825, 5
        %v1828 = vsel %vm690, %v1823, %v1827
        %s1829 = scalar_lea.vmem %s416, 28
        %v1830 = vld [vmem:[%s1829] sm:$0xf]
        %v1831 = vunpack.c.l.b16 %v1746
        %v1832 = vunpack.c.l.b16 %v1756
        %v1833 = vunpack.c.l.b16 %v1770
        %v1834 = vunpack.c.l.b16 %v1780
        %v1835 = vunpack.c.l.b16 %v1794
        %v1836 = vunpack.c.l.b16 %v1804
        %v1837 = vunpack.c.l.b16 %v1818
        %v1838 = vunpack.c.l.b16 %v1828
        %v1839 = vpack.c.b16 %v1832, %v1831
        %v1840 = vpack.c.b16 %v1834, %v1833
        %v1841 = vpack.c.b16 %v1836, %v1835
        %v1842 = vpack.c.b16 %v1838, %v1837
        %v1844 = vsel %vm801, %v1839, 0
        %v1847 = vsel %vm801, %v1840, 0
        %v1850 = vsel %vm801, %v1841, 0
        %v1853 = vsel %vm801, %v1842, 0
        %v1856 = vsel %vm814, %v1830, 0
        %1858 = vmatprep.subr.bf16.mxu0 0
        %1859 = vmatpush1.bf16.msra.mxu0 0
        %1860 = vmatprep.subr.bf16.mxu0 0
        %1861 = vmatpush1.bf16.msra.mxu0 0
        %1862 = vmatprep.subr.bf16.mxu0 0
        %1863 = vmatpush1.bf16.msra.mxu0 0
        %1864 = vmatprep.subr.bf16.mxu0 0
        %1865 = vmatpush1.bf16.msra.mxu0 0
        %1866 = vmatprep.subr.bf16.mxu0 0
        %1867 = vmatpush1.bf16.msra.mxu0 0
        %1868 = vmatprep.subr.bf16.mxu0 0
        %1869 = vmatpush1.bf16.msra.mxu0 0
        %1870 = vmatprep.subr.bf16.mxu0 0
        %1871 = vmatpush1.bf16.msra.mxu0 0
        %1872 = vmatprep.subr.bf16.mxu0 0
        %1873 = vmatpush1.bf16.msra.mxu0 %v1856
        %1874 = vmatprep.subr.bf16.mxu0 0
        %1875 = vmatpush2.bf16.msra.mxu0 0
        %1876 = vmatprep.subr.bf16.mxu0 0
        %1877 = vmatpush2.bf16.msra.mxu0 0
        %1878 = vmatprep.subr.bf16.mxu0 0
        %1879 = vmatpush2.bf16.msra.mxu0 0
        %1880 = vmatprep.subr.bf16.mxu0 0
        %1881 = vmatpush2.bf16.msra.mxu0 0
        %1882 = vmatprep.subr.bf16.mxu0 0
        %1883 = vmatpush2.bf16.msra.mxu0 0
        %1884 = vmatprep.subr.bf16.mxu0 0
        %1885 = vmatpush2.bf16.msra.mxu0 0
        %1886 = vmatprep.subr.bf16.mxu0 0
        %1887 = vmatpush2.bf16.msra.mxu0 0
        %1888 = vmatprep.subr.bf16.mxu0 0
        %1889 = vmatpush2.bf16.msra.mxu0 0
        %1890 = vmatprep.mubr.bf16.mxu0 0
        %1891 = vmatmul.mubr.bf16.gmra.mxu0 %v1844
        %v1892 = vpop.f32.mrf.mxu0
        %v1893 = vadd.f32 0.0, %v1892
        %v1894 = vpop.f32.mrf.mxu0
        %v1895 = vpop.f32.mrf.mxu0
        %v1896 = vadd.f32 0.0, %v1895
        %v1897 = vpop.f32.mrf.mxu0
        %1898 = vmatprep.mubr.bf16.mxu0 0
        %1899 = vmatmul.mubr.bf16.gmra.mxu0 %v1847
        %v1900 = vpop.f32.mrf.mxu0
        %v1901 = vadd.f32 0.0, %v1900
        %v1902 = vpop.f32.mrf.mxu0
        %v1903 = vpop.f32.mrf.mxu0
        %v1904 = vadd.f32 0.0, %v1903
        %v1905 = vpop.f32.mrf.mxu0
        %1906 = vmatprep.mubr.bf16.mxu0 0
        %1907 = vmatmul.mubr.bf16.gmra.mxu0 %v1850
        %v1908 = vpop.f32.mrf.mxu0
        %v1909 = vadd.f32 0.0, %v1908
        %v1910 = vpop.f32.mrf.mxu0
        %v1911 = vpop.f32.mrf.mxu0
        %v1912 = vadd.f32 0.0, %v1911
        %v1913 = vpop.f32.mrf.mxu0
        %1914 = vmatprep.mubr.bf16.mxu0 0
        %1915 = vmatmul.mubr.bf16.gmra.mxu0 %v1853
        %v1916 = vpop.f32.mrf.mxu0
        %v1917 = vadd.f32 0.0, %v1916
        %v1918 = vpop.f32.mrf.mxu0
        %v1919 = vpop.f32.mrf.mxu0
        %v1920 = vadd.f32 0.0, %v1919
        %v1921 = vpop.f32.mrf.mxu0
        %1922 = vdwg.mxu0
        %v1923 = vadd.f32 %v1713, %v1893
        %v1924 = vadd.f32 %v1714, %v1896
        %v1925 = vadd.f32 %v1715, %v1901
        %v1926 = vadd.f32 %v1716, %v1904
        %v1927 = vadd.f32 %v1717, %v1909
        %v1928 = vadd.f32 %v1718, %v1912
        %v1929 = vadd.f32 %v1719, %v1917
        %v1930 = vadd.f32 %v1720, %v1920
        %v1931 = vld [vmem:[%s1602] sm:$0xe]
        %v1932 = vld [vmem:[%s1602 + $0xc] sm:$0xe]
        %v1933 = vld [vmem:[%s1602 + $0x18] sm:$0xe]
        %v1934 = vld [vmem:[%s1602 + $0x24] sm:$0xe]
        %v1947 = vrot.slane %v1931, 5
        %v1948 = vrot.slane %v1947, 4
        %v1949 = vrot.slane %v1722, 5
        %v1950 = vsel %vm997, %v1948, %v1949
        %v1951 = vrot.slane %v1949, 4
        %v1952 = vrot.slane %v1723, 5
        %v1953 = vsel %vm997, %v1951, %v1952
        %v1954 = vrot.slane %v1932, 5
        %v1955 = vrot.slane %v1954, 4
        %v1956 = vrot.slane %v1725, 5
        %v1957 = vsel %vm997, %v1955, %v1956
        %v1958 = vrot.slane %v1956, 4
        %v1959 = vrot.slane %v1726, 5
        %v1960 = vsel %vm997, %v1958, %v1959
        %v1961 = vrot.slane %v1933, 5
        %v1962 = vrot.slane %v1961, 4
        %v1963 = vrot.slane %v1728, 5
        %v1964 = vsel %vm997, %v1962, %v1963
        %v1965 = vrot.slane %v1963, 4
        %v1966 = vrot.slane %v1729, 5
        %v1967 = vsel %vm997, %v1965, %v1966
        %v1968 = vrot.slane %v1934, 5
        %v1969 = vrot.slane %v1968, 4
        %v1970 = vrot.slane %v1731, 5
        %v1971 = vsel %vm997, %v1969, %v1970
        %v1972 = vrot.slane %v1970, 4
        %v1973 = vrot.slane %v1732, 5
        %v1974 = vsel %vm997, %v1972, %v1973
        %s1975 = scalar_lea.vmem %s416, 32
        %v1976 = vld [vmem:[%s1975] sm:$0xf]
        %v1977 = vunpack.c.l.b16 %v1950
        %v1978 = vunpack.c.l.b16 %v1953
        %v1979 = vunpack.c.l.b16 %v1957
        %v1980 = vunpack.c.l.b16 %v1960
        %v1981 = vunpack.c.l.b16 %v1964
        %v1982 = vunpack.c.l.b16 %v1967
        %v1983 = vunpack.c.l.b16 %v1971
        %v1984 = vunpack.c.l.b16 %v1974
        %v1985 = vpack.c.b16 %v1978, %v1977
        %v1986 = vpack.c.b16 %v1980, %v1979
        %v1987 = vpack.c.b16 %v1982, %v1981
        %v1988 = vpack.c.b16 %v1984, %v1983
        %v1990 = vsel %vm801, %v1985, 0
        %v1993 = vsel %vm801, %v1986, 0
        %v1996 = vsel %vm801, %v1987, 0
        %v1999 = vsel %vm801, %v1988, 0
        %v2002 = vsel %vm814, %v1976, 0
        %2004 = vmatprep.subr.bf16.mxu0 0
        %2005 = vmatpush1.bf16.msra.mxu0 0
        %2006 = vmatprep.subr.bf16.mxu0 0
        %2007 = vmatpush1.bf16.msra.mxu0 0
        %2008 = vmatprep.subr.bf16.mxu0 0
        %2009 = vmatpush1.bf16.msra.mxu0 0
        %2010 = vmatprep.subr.bf16.mxu0 0
        %2011 = vmatpush1.bf16.msra.mxu0 0
        %2012 = vmatprep.subr.bf16.mxu0 0
        %2013 = vmatpush1.bf16.msra.mxu0 0
        %2014 = vmatprep.subr.bf16.mxu0 0
        %2015 = vmatpush1.bf16.msra.mxu0 0
        %2016 = vmatprep.subr.bf16.mxu0 0
        %2017 = vmatpush1.bf16.msra.mxu0 0
        %2018 = vmatprep.subr.bf16.mxu0 0
        %2019 = vmatpush1.bf16.msra.mxu0 %v2002
        %2020 = vmatprep.subr.bf16.mxu0 0
        %2021 = vmatpush2.bf16.msra.mxu0 0
        %2022 = vmatprep.subr.bf16.mxu0 0
        %2023 = vmatpush2.bf16.msra.mxu0 0
        %2024 = vmatprep.subr.bf16.mxu0 0
        %2025 = vmatpush2.bf16.msra.mxu0 0
        %2026 = vmatprep.subr.bf16.mxu0 0
        %2027 = vmatpush2.bf16.msra.mxu0 0
        %2028 = vmatprep.subr.bf16.mxu0 0
        %2029 = vmatpush2.bf16.msra.mxu0 0
        %2030 = vmatprep.subr.bf16.mxu0 0
        %2031 = vmatpush2.bf16.msra.mxu0 0
        %2032 = vmatprep.subr.bf16.mxu0 0
        %2033 = vmatpush2.bf16.msra.mxu0 0
        %2034 = vmatprep.subr.bf16.mxu0 0
        %2035 = vmatpush2.bf16.msra.mxu0 0
        %2036 = vmatprep.mubr.bf16.mxu0 0
        %2037 = vmatmul.mubr.bf16.gmra.mxu0 %v1990
        %v2038 = vpop.f32.mrf.mxu0
        %v2039 = vadd.f32 0.0, %v2038
        %v2040 = vpop.f32.mrf.mxu0
        %v2041 = vpop.f32.mrf.mxu0
        %v2042 = vadd.f32 0.0, %v2041
        %v2043 = vpop.f32.mrf.mxu0
        %2044 = vmatprep.mubr.bf16.mxu0 0
        %2045 = vmatmul.mubr.bf16.gmra.mxu0 %v1993
        %v2046 = vpop.f32.mrf.mxu0
        %v2047 = vadd.f32 0.0, %v2046
        %v2048 = vpop.f32.mrf.mxu0
        %v2049 = vpop.f32.mrf.mxu0
        %v2050 = vadd.f32 0.0, %v2049
        %v2051 = vpop.f32.mrf.mxu0
        %2052 = vmatprep.mubr.bf16.mxu0 0
        %2053 = vmatmul.mubr.bf16.gmra.mxu0 %v1996
        %v2054 = vpop.f32.mrf.mxu0
        %v2055 = vadd.f32 0.0, %v2054
        %v2056 = vpop.f32.mrf.mxu0
        %v2057 = vpop.f32.mrf.mxu0
        %v2058 = vadd.f32 0.0, %v2057
        %v2059 = vpop.f32.mrf.mxu0
        %2060 = vmatprep.mubr.bf16.mxu0 0
        %2061 = vmatmul.mubr.bf16.gmra.mxu0 %v1999
        %v2062 = vpop.f32.mrf.mxu0
        %v2063 = vadd.f32 0.0, %v2062
        %v2064 = vpop.f32.mrf.mxu0
        %v2065 = vpop.f32.mrf.mxu0
        %v2066 = vadd.f32 0.0, %v2065
        %v2067 = vpop.f32.mrf.mxu0
        %2068 = vdwg.mxu0
        %v2069 = vadd.f32 %v1923, %v2039
        %v2070 = vadd.f32 %v1924, %v2042
        %v2071 = vadd.f32 %v1925, %v2047
        %v2072 = vadd.f32 %v1926, %v2050
        %v2073 = vadd.f32 %v1927, %v2055
        %v2074 = vadd.f32 %v1928, %v2058
        %v2075 = vadd.f32 %v1929, %v2063
        %v2076 = vadd.f32 %v1930, %v2066
        %v2077 = vld [vmem:[%s419] sm:$0x1]
        %v2079 = vlaneseq
        %v2080 = vshrl.u32 %v2079, 7
        %v2081 = vsub.s32 0, %v2080
        %v2082 = vrot.slane %v2077, %v2081
        %v2084 = vadd.f32 %v2069, %v2082
        %v2085 = vadd.f32 %v2070, %v2082
        %v2086 = vadd.f32 %v2071, %v2082
        %v2087 = vadd.f32 %v2072, %v2082
        %v2088 = vadd.f32 %v2073, %v2082
        %v2089 = vadd.f32 %v2074, %v2082
        %v2090 = vadd.f32 %v2075, %v2082
        %v2091 = vadd.f32 %v2076, %v2082
        %v2092 = vpack.c.bf16 %v2085, %v2084
        %v2093 = vpack.c.bf16 %v2087, %v2086
        %v2094 = vpack.c.bf16 %v2089, %v2088
        %v2095 = vpack.c.bf16 %v2091, %v2090
        %v2100 = vunpack.c.l.b16 %v2092
        %v2101 = vunpack.c.h.b16 %v2092
        %v2102 = vunpack.c.l.b16 %v2093
        %v2103 = vunpack.c.h.b16 %v2093
        %v2104 = vunpack.c.l.b16 %v2094
        %v2105 = vunpack.c.h.b16 %v2094
        %v2106 = vunpack.c.l.b16 %v2095
        %v2107 = vunpack.c.h.b16 %v2095
        %v2108 = vpack.c.b16 %v2100, %v2100
        %v2109 = vpack.c.b16 %v2101, %v2101
        %v2110 = vpack.c.b16 %v2102, %v2102
        %v2111 = vpack.c.b16 %v2103, %v2103
        %v2112 = vpack.c.b16 %v2104, %v2104
        %v2113 = vpack.c.b16 %v2105, %v2105
        %v2114 = vpack.c.b16 %v2106, %v2106
        %v2115 = vpack.c.b16 %v2107, %v2107
        %vm2124 = vcmask 125952
        %2125 = vst.msk [vmem:[%s367] sm:$0xf] %vm2124, %v2108
        %2126 = vst.msk [vmem:[%s367 + $0x4] sm:$0xf] %vm2124, %v2109
        %2127 = vst.msk [vmem:[%s367 + $0x8] sm:$0xf] %vm2124, %v2110
        %2128 = vst.msk [vmem:[%s367 + $0xc] sm:$0xf] %vm2124, %v2111
        %2129 = vst.msk [vmem:[%s367 + $0x10] sm:$0xf] %vm2124, %v2112
        %2130 = vst.msk [vmem:[%s367 + $0x14] sm:$0xf] %vm2124, %v2113
        %2131 = vst.msk [vmem:[%s367 + $0x18] sm:$0xf] %vm2124, %v2114
        %2132 = vst.msk [vmem:[%s367 + $0x1c] sm:$0xf] %vm2124, %v2115
        %s2133 = sand.u32 %s202, 1
        %s2134 = scalar_lea.sflag [#allocation4], %s2133
        %s2135 = sand.u32 %s202, 1
        %s2136 = smul.addr %s2135, 32
        %s2137 = scalar_lea.vmem [#allocation3], %s2136
        // Predicated region
        $region57: #{tpu_custom_call.1} parent=39 // pred_check
          %p2138 = pneg %p212
        $region58: #{tpu_custom_call.1} parent=39 // pred_check_branch
          %2140 = sbr.rel (%p2138) target = $region60
        $region59: #{tpu_custom_call.1} parent=39 // pred_region
          %s2141 = smul.u32 4, %s26
          %s2143 = ssub.s32 512, 512
          %2144 = vsyncadd %s2134, %s2143
          %s2145 = smul.addr %s2141, 2
          %s2146 = sadd.s32 %s24, %s2145
          %s2147 = smul.addr %s25, 32
          %s2148 = sadd.s32 %s2146, %s2147
          %s2149 = smul.addr %s2148, 64
          %s2150 = scalar_lea.hbm %s5, %s2149
          %s2151 = sshll.u32 %s2137, 4
          %s2152 = int_to_ptr.vmem [resolvable:$true] %s2151
          %2157 = dma.vmem_to_hbm [thread:$0]  %s2152, 512, %s2150, %s2134, 64, 64, 4
        $region60: #{tpu_custom_call.1} parent=39 // pred_fallthru
          _
      $region40: #{tpu_custom_call.1} parent=5 // pred_fallthru
        _
      %p2158 = scmp.le.s32.totalorder 2, %s14
      // Predicated region
      $region61: #{tpu_custom_call.1} parent=5 // pred_check
        %p2159 = pneg %p2158
      $region62: #{tpu_custom_call.1} parent=5 // pred_check_branch
        %2161 = sbr.rel (%p2159) target = $region64
      $region63: #{tpu_custom_call.1} parent=5 // pred_region
        %s2162 = ssub.s32 %s14, 2
        // Predicated region
        $region65: #{tpu_custom_call.1} parent=63 // pred_check
          %p2163 = pneg %p218
        $region66: #{tpu_custom_call.1} parent=63 // pred_check_branch
          %2165 = sbr.rel (%p2163) target = $region68
        $region67: #{tpu_custom_call.1} parent=63 // pred_region
          %s2166 = sand.u32 %s203, 1
          %s2167 = scalar_lea.sflag [#allocation4], %s2166
          %s2168 = sand.u32 %s203, 1
          %s2169 = smul.addr %s2168, 32
          %s2170 = scalar_lea.vmem [#allocation3], %s2169
          %2171 = dma.done %s2167, 512
        $region68: #{tpu_custom_call.1} parent=63 // pred_fallthru
          _
      $region64: #{tpu_custom_call.1} parent=5 // pred_fallthru
        _
    $region6: #{tpu_custom_call.1} parent=1 // loop_footer
      %s18 = sadd.s32 1, %s14
    $region7: #{tpu_custom_call.1} parent=1 // loop_footer_branch
      %13 = sbr.rel target = $region3
    $region8: #{tpu_custom_call.1} parent=1 // loop_exit
      _
    %2172 = vsyncpa [#allocation4], 1
    %s2173 = scalar_lea.sflag [#allocation4], 1
    %2174 = vsyncpa %s2173, 1

</llo_original>
